<compile_context>
chip_gen: v6e
topology: v6e:2x2x1
jax: 0.10.0
libtpu: 0.0.40
codegen_flags: <defaults>
</compile_context>

<pallas_src>
from functools import partial

import jax
import jax.numpy as jnp
from jax.experimental import pallas as pl
from jax.experimental.pallas import tpu as pltpu

_LANES = 128  # lane width of the fused head / output tile


def _round_up(x, m):
    return ((x + m - 1) // m) * m


def _dqn_kernel(action_dim,
                s_ref, w1_ref, b1_ref, w2_ref, b2_ref,
                wh1_ref, bh1_ref, wh2_ref, bh2_ref, q_ref):
    """Full dueling-DQN MLP forward for one batch tile (weights resident in VMEM)."""
    f32 = jnp.float32

    def dense_relu(x, w_ref, b_ref):
        # bf16 operands on the MXU, f32 accumulation, f32 elementwise (VPU).
        y = jnp.dot(x.astype(w_ref.dtype), w_ref[...],
                    preferred_element_type=f32)
        return jnp.maximum(y + b_ref[...].astype(f32), 0.0)

    x = dense_relu(s_ref[...], w1_ref, b1_ref)        # (TB, 512)
    x = dense_relu(x, w2_ref, b2_ref)                 # (TB, 256)
    h = dense_relu(x, wh1_ref, bh1_ref)               # (TB, 384) = [adv_h | val_h]
    h2 = dense_relu(h, wh2_ref, bh2_ref)              # (TB, 128): [:A]=adv, [A]=val, rest 0

    lane = jax.lax.broadcasted_iota(jnp.int32, h2.shape, 1)
    # per-row value (lane A) and per-row advantage sum (lanes < A), via lane reductions
    val = jnp.sum(jnp.where(lane == action_dim, h2, 0.0), axis=-1, keepdims=True)
    adv_row_sum = jnp.sum(jnp.where(lane < action_dim, h2, 0.0), axis=-1, keepdims=True)

    # cols [0, A): val + adv (global mean subtracted in the wrapper)
    # last col    : per-row adv sum, used by the wrapper for the global mean
    q_ref[...] = jnp.where(lane == q_ref.shape[-1] - 1, adv_row_sum, val + h2)


def pack_params(params):
    """Fuse the adv/val heads into lane-dense weights and cast everything to bf16."""
    (w1, b1, w2, b2, wa1, ba1, wa2, ba2, wv1, bv1, wv2, bv2) = params
    A = wa2.shape[1]
    assert A <= _LANES - 2, "action_dim must fit in the 128-lane fused head"
    ka, kv = wa2.shape[0], wv2.shape[0]               # 256, 128

    # head level 1: [adv1 | val1] -> (256, 384)
    wh1 = jnp.concatenate([wa1, wv1], axis=1)
    bh1 = jnp.concatenate([ba1, bv1], axis=1)

    # head level 2: block-diagonal (384, 128); adv2 -> cols [0, A), val2 -> col A
    wh2 = jnp.zeros((ka + kv, _LANES), jnp.float32)
    wh2 = wh2.at[:ka, :A].set(wa2)
    wh2 = wh2.at[ka:, A:A + 1].set(wv2)
    bh2 = jnp.zeros((1, _LANES), jnp.float32)
    bh2 = bh2.at[:, :A].set(ba2)
    bh2 = bh2.at[:, A:A + 1].set(bv2)

    bf16 = jnp.bfloat16
    return tuple(t.astype(bf16) for t in (w1, b1, w2, b2, wh1, bh1, wh2, bh2)), A


def dueling_dqn_forward(state, params, max_tile_b=512):
    packed, A = pack_params(params)
    w1, b1, w2, b2, wh1, bh1, wh2, bh2 = packed
    B, S = state.shape

    # Batch tile: multiple of 8 sublanes, capped so activations + double-buffered
    # state/output tiles stay comfortably inside the scoped-VMEM budget.
    tile_b = min(max_tile_b, _round_up(B, 8))
    b_pad = _round_up(B, tile_b)
    if b_pad != B:
        state = jnp.pad(state, ((0, b_pad - B), (0, 0)))
    num_tiles = b_pad // tile_b

    def const_spec(shape):
        return pl.BlockSpec(shape, lambda i: (0, 0))   # weights stay VMEM-resident

    out = pl.pallas_call(
        partial(_dqn_kernel, A),
        out_shape=jax.ShapeDtypeStruct((b_pad, _LANES), jnp.float32),
        grid=(num_tiles,),
        in_specs=[
            pl.BlockSpec((tile_b, S), lambda i: (i, 0)),   # state tile advances
            const_spec(w1.shape), const_spec(b1.shape),
            const_spec(w2.shape), const_spec(b2.shape),
            const_spec(wh1.shape), const_spec(bh1.shape),
            const_spec(wh2.shape), const_spec(bh2.shape),
        ],
        out_specs=pl.BlockSpec((tile_b, _LANES), lambda i: (i, 0)),
        compiler_params=pltpu.CompilerParams(
            dimension_semantics=("parallel",)),
    )(state, w1, b1, w2, b2, wh1, bh1, wh2, bh2)

    # Global adv.mean() (over batch AND actions), exactly as in the PyTorch module;
    # padded rows/lanes are excluded because only the true rows' per-row sums count.
    adv_mean = jnp.sum(out[:B, -1]) / (B * A)
    return out[:B, :A] - adv_mean


def make_params(key, state_dim, action_dim):
    """Deterministic synthetic init mirroring _init_weights: uniform(-0.1, 0.1).

    Weights are pre-transposed to (in_features, out_features); biases are (1, out)."""
    dims = [
        (state_dim, 512),   # l1
        (512, 256),         # l2
        (256, 256),         # adv1
        (256, action_dim),  # adv2
        (256, 128),         # val1
        (128, 1),           # val2
    ]
    params = []
    for (d_in, d_out) in dims:
        key, kw, kb = jax.random.split(key, 3)
        params.append(jax.random.uniform(kw, (d_in, d_out), jnp.float32, -0.1, 0.1))
        params.append(jax.random.uniform(kb, (1, d_out), jnp.float32, -0.1, 0.1))
    return tuple(params)


def reference_forward(state, params):
    """Pure-JAX reference matching PyTorch DNN.forward, mirroring the kernel's
    precision choices (bf16 params/activations, f32 accumulation)."""
    (w1, b1, w2, b2, wa1, ba1, wa2, ba2, wv1, bv1, wv2, bv2) = params
    bf16, f32 = jnp.bfloat16, jnp.float32

    def dense_relu(x, w, b):
        y = jnp.dot(x.astype(bf16), w.astype(bf16), preferred_element_type=f32)
        return jnp.maximum(y + b.astype(bf16).astype(f32), 0.0)

    x = dense_relu(state, w1, b1)
    x = dense_relu(x, w2, b2)
    adv = dense_relu(x, wa1, ba1)
    adv = dense_relu(adv, wa2, ba2)
    val = dense_relu(x, wv1, bv1)
    val = dense_relu(val, wv2, bv2)
    return val + (adv - jnp.mean(adv))   # global mean, matching PyTorch adv.mean()


if __name__ == "__main__":
    key = jax.random.PRNGKey(0)
    state_dim, action_dim = 64, 16
    k_params, k_s1, k_s2 = jax.random.split(key, 3)
    params = make_params(k_params, state_dim, action_dim)

    # Small-batch path (single grid step).
    state = jax.random.normal(k_s1, (8, state_dim), jnp.float32)
    q = jax.block_until_ready(dueling_dqn_forward(state, params))
    assert q.shape == (8, action_dim)
    assert jnp.allclose(q, reference_forward(state, params), atol=2e-3, rtol=2e-3)

    # Multi-tile path (exercises the batch grid, resident weights and the
    # cross-tile global advantage mean).
    state_big = jax.random.normal(k_s2, (1024, state_dim), jnp.float32)
    q_big = jax.block_until_ready(dueling_dqn_forward(state_big, params))
    assert q_big.shape == (1024, action_dim)
    assert jnp.allclose(q_big, reference_forward(state_big, params),
                        atol=2e-3, rtol=2e-3)

    print("KERNEL_OK")
</pallas_src>

<mosaic_0001>
module attributes {stable_mosaic.version = 11 : i64} {
  func.func @_dqn_kernel(%arg0: i32, %arg1: memref<8x64xf32, #tpu.memory_space<vmem>>, %arg2: memref<64x512xbf16, #tpu.memory_space<vmem>>, %arg3: memref<1x512xbf16, #tpu.memory_space<vmem>>, %arg4: memref<512x256xbf16, #tpu.memory_space<vmem>>, %arg5: memref<1x256xbf16, #tpu.memory_space<vmem>>, %arg6: memref<256x384xbf16, #tpu.memory_space<vmem>>, %arg7: memref<1x384xbf16, #tpu.memory_space<vmem>>, %arg8: memref<384x128xbf16, #tpu.memory_space<vmem>>, %arg9: memref<1x128xbf16, #tpu.memory_space<vmem>>, %arg10: memref<8x128xf32, #tpu.memory_space<vmem>>) attributes {dimension_semantics = [#tpu.dimension_semantics<parallel>], iteration_bounds = array<i64: 1>, scalar_prefetch = 0 : i64, scratch_operands = 0 : i64, tpu.core_type = #tpu.core_type<tc>, window_params = [{transform_indices = @transform_0, window_bounds = array<i64: 8, 64>}, {pipeline_mode = #tpu.pipeline_mode<synchronous>, transform_indices = @transform_1, window_bounds = array<i64: 64, 512>}, {pipeline_mode = #tpu.pipeline_mode<synchronous>, transform_indices = @transform_2, window_bounds = array<i64: 1, 512>}, {pipeline_mode = #tpu.pipeline_mode<synchronous>, transform_indices = @transform_3, window_bounds = array<i64: 512, 256>}, {pipeline_mode = #tpu.pipeline_mode<synchronous>, transform_indices = @transform_4, window_bounds = array<i64: 1, 256>}, {pipeline_mode = #tpu.pipeline_mode<synchronous>, transform_indices = @transform_5, window_bounds = array<i64: 256, 384>}, {pipeline_mode = #tpu.pipeline_mode<synchronous>, transform_indices = @transform_6, window_bounds = array<i64: 1, 384>}, {pipeline_mode = #tpu.pipeline_mode<synchronous>, transform_indices = @transform_7, window_bounds = array<i64: 384, 128>}, {pipeline_mode = #tpu.pipeline_mode<synchronous>, transform_indices = @transform_8, window_bounds = array<i64: 1, 128>}, {transform_indices = @transform_9, window_bounds = array<i64: 8, 128>}]} {
    %c0 = arith.constant 0 : index
    %c0_0 = arith.constant 0 : index
    %0 = vector.load %arg1[%c0, %c0_0] : memref<8x64xf32, #tpu.memory_space<vmem>>, vector<8x64xf32>
    %1 = arith.truncf %0 : vector<8x64xf32> to vector<8x64xbf16>
    %c0_1 = arith.constant 0 : index
    %c0_2 = arith.constant 0 : index
    %2 = vector.load %arg2[%c0_1, %c0_2] : memref<64x512xbf16, #tpu.memory_space<vmem>>, vector<64x512xbf16>
    %cst = arith.constant dense<0.000000e+00> : vector<8x512xf32>
    %3 = tpu.matmul %1, %2, %cst {dimension_numbers = #tpu.dot_dimension_numbers<[1], [0], [0], [1], [0, 0, 1, 1], [], []>} : vector<8x64xbf16>, vector<64x512xbf16>, vector<8x512xf32> -> vector<8x512xf32>
    %c0_3 = arith.constant 0 : index
    %c0_4 = arith.constant 0 : index
    %4 = vector.load %arg3[%c0_3, %c0_4] : memref<1x512xbf16, #tpu.memory_space<vmem>>, vector<1x512xbf16>
    %5 = arith.extf %4 : vector<1x512xbf16> to vector<1x512xf32>
    %6 = vector.broadcast %5 : vector<1x512xf32> to vector<8x512xf32>
    %7 = arith.addf %3, %6 : vector<8x512xf32>
    %cst_5 = arith.constant 0.000000e+00 : f32
    %8 = vector.broadcast %cst_5 : f32 to vector<8x512xf32>
    %9 = arith.maximumf %7, %8 : vector<8x512xf32>
    %10 = arith.truncf %9 : vector<8x512xf32> to vector<8x512xbf16>
    %c0_6 = arith.constant 0 : index
    %c0_7 = arith.constant 0 : index
    %11 = vector.load %arg4[%c0_6, %c0_7] : memref<512x256xbf16, #tpu.memory_space<vmem>>, vector<512x256xbf16>
    %cst_8 = arith.constant dense<0.000000e+00> : vector<8x256xf32>
    %12 = tpu.matmul %10, %11, %cst_8 {dimension_numbers = #tpu.dot_dimension_numbers<[1], [0], [0], [1], [0, 0, 1, 1], [], []>} : vector<8x512xbf16>, vector<512x256xbf16>, vector<8x256xf32> -> vector<8x256xf32>
    %c0_9 = arith.constant 0 : index
    %c0_10 = arith.constant 0 : index
    %13 = vector.load %arg5[%c0_9, %c0_10] : memref<1x256xbf16, #tpu.memory_space<vmem>>, vector<1x256xbf16>
    %14 = arith.extf %13 : vector<1x256xbf16> to vector<1x256xf32>
    %15 = vector.broadcast %14 : vector<1x256xf32> to vector<8x256xf32>
    %16 = arith.addf %12, %15 : vector<8x256xf32>
    %cst_11 = arith.constant 0.000000e+00 : f32
    %17 = vector.broadcast %cst_11 : f32 to vector<8x256xf32>
    %18 = arith.maximumf %16, %17 : vector<8x256xf32>
    %19 = arith.truncf %18 : vector<8x256xf32> to vector<8x256xbf16>
    %c0_12 = arith.constant 0 : index
    %c0_13 = arith.constant 0 : index
    %20 = vector.load %arg6[%c0_12, %c0_13] : memref<256x384xbf16, #tpu.memory_space<vmem>>, vector<256x384xbf16>
    %cst_14 = arith.constant dense<0.000000e+00> : vector<8x384xf32>
    %21 = tpu.matmul %19, %20, %cst_14 {dimension_numbers = #tpu.dot_dimension_numbers<[1], [0], [0], [1], [0, 0, 1, 1], [], []>} : vector<8x256xbf16>, vector<256x384xbf16>, vector<8x384xf32> -> vector<8x384xf32>
    %c0_15 = arith.constant 0 : index
    %c0_16 = arith.constant 0 : index
    %22 = vector.load %arg7[%c0_15, %c0_16] : memref<1x384xbf16, #tpu.memory_space<vmem>>, vector<1x384xbf16>
    %23 = arith.extf %22 : vector<1x384xbf16> to vector<1x384xf32>
    %24 = vector.broadcast %23 : vector<1x384xf32> to vector<8x384xf32>
    %25 = arith.addf %21, %24 : vector<8x384xf32>
    %cst_17 = arith.constant 0.000000e+00 : f32
    %26 = vector.broadcast %cst_17 : f32 to vector<8x384xf32>
    %27 = arith.maximumf %25, %26 : vector<8x384xf32>
    %28 = arith.truncf %27 : vector<8x384xf32> to vector<8x384xbf16>
    %c0_18 = arith.constant 0 : index
    %c0_19 = arith.constant 0 : index
    %29 = vector.load %arg8[%c0_18, %c0_19] : memref<384x128xbf16, #tpu.memory_space<vmem>>, vector<384x128xbf16>
    %cst_20 = arith.constant dense<0.000000e+00> : vector<8x128xf32>
    %30 = tpu.matmul %28, %29, %cst_20 {dimension_numbers = #tpu.dot_dimension_numbers<[1], [0], [0], [1], [0, 0, 1, 1], [], []>} : vector<8x384xbf16>, vector<384x128xbf16>, vector<8x128xf32> -> vector<8x128xf32>
    %c0_21 = arith.constant 0 : index
    %c0_22 = arith.constant 0 : index
    %31 = vector.load %arg9[%c0_21, %c0_22] : memref<1x128xbf16, #tpu.memory_space<vmem>>, vector<1x128xbf16>
    %32 = arith.extf %31 : vector<1x128xbf16> to vector<1x128xf32>
    %33 = vector.broadcast %32 : vector<1x128xf32> to vector<8x128xf32>
    %34 = arith.addf %30, %33 : vector<8x128xf32>
    %cst_23 = arith.constant 0.000000e+00 : f32
    %35 = vector.broadcast %cst_23 : f32 to vector<8x128xf32>
    %36 = arith.maximumf %34, %35 : vector<8x128xf32>
    %37 = tpu.iota {dimensions = array<i32: 1>} : vector<8x128xi32>
    %c16_i32 = arith.constant 16 : i32
    %38 = vector.broadcast %c16_i32 : i32 to vector<8x128xi32>
    %39 = arith.cmpi eq, %37, %38 : vector<8x128xi32>
    %cst_24 = arith.constant 0.000000e+00 : f32
    %40 = vector.broadcast %cst_24 : f32 to vector<8x128xf32>
    %41 = arith.select %39, %36, %40 : vector<8x128xi1>, vector<8x128xf32>
    %cst_25 = arith.constant dense<0.000000e+00> : vector<8xf32>
    %42 = vector.multi_reduction <add>, %41, %cst_25 [1] : vector<8x128xf32> to vector<8xf32>
    %43 = vector.shape_cast %42 : vector<8xf32> to vector<8x1xf32>
    %c16_i32_26 = arith.constant 16 : i32
    %44 = vector.broadcast %c16_i32_26 : i32 to vector<8x128xi32>
    %45 = arith.cmpi slt, %37, %44 : vector<8x128xi32>
    %cst_27 = arith.constant 0.000000e+00 : f32
    %46 = vector.broadcast %cst_27 : f32 to vector<8x128xf32>
    %47 = arith.select %45, %36, %46 : vector<8x128xi1>, vector<8x128xf32>
    %cst_28 = arith.constant dense<0.000000e+00> : vector<8xf32>
    %48 = vector.multi_reduction <add>, %47, %cst_28 [1] : vector<8x128xf32> to vector<8xf32>
    %49 = vector.shape_cast %48 : vector<8xf32> to vector<8x1xf32>
    %c127_i32 = arith.constant 127 : i32
    %50 = vector.broadcast %c127_i32 : i32 to vector<8x128xi32>
    %51 = arith.cmpi eq, %37, %50 : vector<8x128xi32>
    %52 = vector.broadcast %43 : vector<8x1xf32> to vector<8x128xf32>
    %53 = arith.addf %52, %36 : vector<8x128xf32>
    %54 = vector.shape_cast %49 : vector<8x1xf32> to vector<8x1xf32>
    %55 = vector.broadcast %54 : vector<8x1xf32> to vector<8x128xf32>
    %56 = arith.select %51, %55, %53 : vector<8x128xi1>, vector<8x128xf32>
    %c0_29 = arith.constant 0 : index
    %c0_30 = arith.constant 0 : index
    %57 = vector.load %arg10[%c0_29, %c0_30] : memref<8x128xf32, #tpu.memory_space<vmem>>, vector<8x128xf32>
    tpu.vector_store %arg10[%c0_29, %c0_30], %56 {strides = array<i32>} : memref<8x128xf32, #tpu.memory_space<vmem>>, vector<8x128xf32>,
    return
  }
  func.func @transform_0(%arg0: i32) -> (i32, i32) {
    %c0_i32 = arith.constant 0 : i32
    %c0_i32_0 = arith.constant 0 : i32
    return %arg0, %c0_i32 : i32, i32
  }
  func.func @transform_1(%arg0: i32) -> (i32, i32) {
    %c0_i32 = arith.constant 0 : i32
    %c0_i32_0 = arith.constant 0 : i32
    %c0_i32_1 = arith.constant 0 : i32
    return %c0_i32, %c0_i32_0 : i32, i32
  }
  func.func @transform_2(%arg0: i32) -> (i32, i32) {
    %c0_i32 = arith.constant 0 : i32
    %c0_i32_0 = arith.constant 0 : i32
    %c0_i32_1 = arith.constant 0 : i32
    return %c0_i32, %c0_i32_0 : i32, i32
  }
  func.func @transform_3(%arg0: i32) -> (i32, i32) {
    %c0_i32 = arith.constant 0 : i32
    %c0_i32_0 = arith.constant 0 : i32
    %c0_i32_1 = arith.constant 0 : i32
    return %c0_i32, %c0_i32_0 : i32, i32
  }
  func.func @transform_4(%arg0: i32) -> (i32, i32) {
    %c0_i32 = arith.constant 0 : i32
    %c0_i32_0 = arith.constant 0 : i32
    %c0_i32_1 = arith.constant 0 : i32
    return %c0_i32, %c0_i32_0 : i32, i32
  }
  func.func @transform_5(%arg0: i32) -> (i32, i32) {
    %c0_i32 = arith.constant 0 : i32
    %c0_i32_0 = arith.constant 0 : i32
    %c0_i32_1 = arith.constant 0 : i32
    return %c0_i32, %c0_i32_0 : i32, i32
  }
  func.func @transform_6(%arg0: i32) -> (i32, i32) {
    %c0_i32 = arith.constant 0 : i32
    %c0_i32_0 = arith.constant 0 : i32
    %c0_i32_1 = arith.constant 0 : i32
    return %c0_i32, %c0_i32_0 : i32, i32
  }
  func.func @transform_7(%arg0: i32) -> (i32, i32) {
    %c0_i32 = arith.constant 0 : i32
    %c0_i32_0 = arith.constant 0 : i32
    %c0_i32_1 = arith.constant 0 : i32
    return %c0_i32, %c0_i32_0 : i32, i32
  }
  func.func @transform_8(%arg0: i32) -> (i32, i32) {
    %c0_i32 = arith.constant 0 : i32
    %c0_i32_0 = arith.constant 0 : i32
    %c0_i32_1 = arith.constant 0 : i32
    return %c0_i32, %c0_i32_0 : i32, i32
  }
  func.func @transform_9(%arg0: i32) -> (i32, i32) {
    %c0_i32 = arith.constant 0 : i32
    %c0_i32_0 = arith.constant 0 : i32
    return %arg0, %c0_i32 : i32, i32
  }
}

</mosaic_0001>

<llo_original>
// kernel: tpu_custom_call.1
$region0: #{tpu_custom_call.1}
  #allocation0 [shape = 'u32[]', space=smem, size = 0x4, offset = 0x4, fixed_abs, tag = 'smem constant byte address 0x4 - core index']
  #allocation1 [shape = 'u32[144,128]{1,0:T(1,128)}', space=vmem, size = 0x12000, scoped, tag = 'internal scratch']
  %s0 = inlined_call_operand.hbm [shape: f32[8,64], index: 0, kind: input, shape index: {}]
  %s1 = inlined_call_operand.hbm [shape: bf16[64,512], index: 1, kind: input, shape index: {}]
  %s2 = inlined_call_operand.hbm [shape: bf16[1,512], index: 2, kind: input, shape index: {}]
  %s3 = inlined_call_operand.hbm [shape: bf16[512,256], index: 3, kind: input, shape index: {}]
  %s4 = inlined_call_operand.vmem [shape: bf16[1,256], index: 4, kind: input, shape index: {}]
  %s5 = inlined_call_operand.hbm [shape: bf16[256,384], index: 5, kind: input, shape index: {}]
  %s6 = inlined_call_operand.vmem [shape: bf16[1,384], index: 6, kind: input, shape index: {}]
  %s7 = inlined_call_operand.hbm [shape: bf16[384,128], index: 7, kind: input, shape index: {}]
  %s8 = inlined_call_operand.vmem [shape: bf16[1,128], index: 8, kind: input, shape index: {}]
  %s9 = inlined_call_operand.hbm [shape: f32[8,128], index: 9, kind: output, shape index: {}]
  %s10 = sld [smem:[#allocation0]]
  $region70: #{tpu_custom_call.1} parent=0
    _
  %s12 = ssub.s32 1, %s10
  %s13 = scalar_select 0, %s12, %s10
  $region1: #{tpu_custom_call.1} parent=0
    #allocation2 [shape = 'u8[4096]{0}', space=vmem, size = 0x1000, scoped, tag = 'input window, operand 0, single buffered']
    #allocation3 [shape = 's32[1]{0}', space=sflag, size = 0x4, scoped, tag = 'scoped memory for tpu_custom_call.1']
    #allocation4 [shape = 's32[1]{0}', space=sflag, size = 0x4, scoped, tag = 'scoped memory for tpu_custom_call.1']
    #allocation5 [shape = 'u8[65536]{0}', space=vmem, size = 0x10000, scoped, tag = 'input window, operand 1, single buffered']
    #allocation6 [shape = 's32[1]{0}', space=sflag, size = 0x4, scoped, tag = 'scoped memory for tpu_custom_call.1']
    #allocation7 [shape = 'u8[2048]{0}', space=vmem, size = 0x800, scoped, tag = 'input window, operand 2, single buffered']
    #allocation8 [shape = 'u8[262144]{0}', space=vmem, size = 0x40000, scoped, tag = 'input window, operand 3, single buffered']
    #allocation9 [shape = 's32[1]{0}', space=sflag, size = 0x4, scoped, tag = 'scoped memory for tpu_custom_call.1']
    #allocation10 [shape = 'u8[196608]{0}', space=vmem, size = 0x30000, scoped, tag = 'input window, operand 5, single buffered']
    #allocation11 [shape = 'u8[98304]{0}', space=vmem, size = 0x18000, scoped, tag = 'input window, operand 7, single buffered']
    #allocation12 [shape = 's32[1]{0}', space=sflag, size = 0x4, scoped, tag = 'scoped memory for tpu_custom_call.1']
    #allocation13 [shape = 'u8[4096]{0}', space=vmem, size = 0x1000, scoped, tag = 'output window, operand 0, single buffered']
    %14 = vsyncpa [#allocation3], 0
    %15 = vsyncpa [#allocation6], 0
    %16 = vsyncpa [#allocation9], 0
    %17 = vsyncpa [#allocation12], 0
    %18 = vsyncpa [#allocation4], 0
    // Predicated region
    $region2: #{tpu_custom_call.1} parent=1 // pred_check
      _
    $region3: #{tpu_custom_call.1} parent=1 // pred_check_branch
      %20 = sbr.rel (0) target = $region5
    $region4: #{tpu_custom_call.1} parent=1 // pred_region
      %s22 = ssub.s32 128, 128
      %23 = vsyncadd [#allocation3], %s22
      %s25 = sshll.u32 [#allocation2], 4
      %s26 = int_to_ptr.vmem [resolvable:$true] %s25
      %28 = dma.hbm_to_vmem [thread:$0]  %s0, 128, %s26, [#allocation3]
    $region5: #{tpu_custom_call.1} parent=1 // pred_fallthru
      _
    // Predicated region
    $region6: #{tpu_custom_call.1} parent=1 // pred_check
      _
    $region7: #{tpu_custom_call.1} parent=1 // pred_check_branch
      %30 = sbr.rel (0) target = $region9
    $region8: #{tpu_custom_call.1} parent=1 // pred_region
      %s32 = ssub.s32 2048, 2048
      %33 = vsyncadd [#allocation6], %s32
      %s34 = sshll.u32 [#allocation5], 4
      %s35 = int_to_ptr.vmem [resolvable:$true] %s34
      %40 = dma.hbm_to_vmem [thread:$0]  %s1, 2048, %s35, [#allocation6], 256, 256, 16
    $region9: #{tpu_custom_call.1} parent=1 // pred_fallthru
      _
    // Predicated region
    $region10: #{tpu_custom_call.1} parent=1 // pred_check
      _
    $region11: #{tpu_custom_call.1} parent=1 // pred_check_branch
      %42 = sbr.rel (0) target = $region13
    $region12: #{tpu_custom_call.1} parent=1 // pred_region
      %s44 = ssub.s32 64, 64
      %45 = vsyncadd [#allocation6], %s44
      %s47 = sshll.u32 [#allocation7], 4
      %s48 = int_to_ptr.vmem [resolvable:$true] %s47
      %50 = dma.hbm_to_vmem [thread:$0]  %s2, 64, %s48, [#allocation6]
    $region13: #{tpu_custom_call.1} parent=1 // pred_fallthru
      _
    // Predicated region
    $region14: #{tpu_custom_call.1} parent=1 // pred_check
      _
    $region15: #{tpu_custom_call.1} parent=1 // pred_check_branch
      %52 = sbr.rel (0) target = $region17
    $region16: #{tpu_custom_call.1} parent=1 // pred_region
      %s54 = ssub.s32 8192, 8192
      %55 = vsyncadd [#allocation9], %s54
      %s56 = sshll.u32 [#allocation8], 4
      %s57 = int_to_ptr.vmem [resolvable:$true] %s56
      %62 = dma.hbm_to_vmem [thread:$0]  %s3, 8192, %s57, [#allocation9], 128, 128, 8
    $region17: #{tpu_custom_call.1} parent=1 // pred_fallthru
      _
    // Predicated region
    $region18: #{tpu_custom_call.1} parent=1 // pred_check
      _
    $region19: #{tpu_custom_call.1} parent=1 // pred_check_branch
      %64 = sbr.rel (0) target = $region21
    $region20: #{tpu_custom_call.1} parent=1 // pred_region
      _
    $region21: #{tpu_custom_call.1} parent=1 // pred_fallthru
      _
    // Predicated region
    $region22: #{tpu_custom_call.1} parent=1 // pred_check
      _
    $region23: #{tpu_custom_call.1} parent=1 // pred_check_branch
      %66 = sbr.rel (0) target = $region25
    $region24: #{tpu_custom_call.1} parent=1 // pred_region
      %s68 = ssub.s32 6144, 6144
      %69 = vsyncadd [#allocation9], %s68
      %s70 = sshll.u32 [#allocation10], 4
      %s71 = int_to_ptr.vmem [resolvable:$true] %s70
      %76 = dma.hbm_to_vmem [thread:$0]  %s5, 6144, %s71, [#allocation9], 192, 192, 12
    $region25: #{tpu_custom_call.1} parent=1 // pred_fallthru
      _
    // Predicated region
    $region26: #{tpu_custom_call.1} parent=1 // pred_check
      _
    $region27: #{tpu_custom_call.1} parent=1 // pred_check_branch
      %78 = sbr.rel (0) target = $region29
    $region28: #{tpu_custom_call.1} parent=1 // pred_region
      _
    $region29: #{tpu_custom_call.1} parent=1 // pred_fallthru
      _
    // Predicated region
    $region30: #{tpu_custom_call.1} parent=1 // pred_check
      _
    $region31: #{tpu_custom_call.1} parent=1 // pred_check_branch
      %80 = sbr.rel (0) target = $region33
    $region32: #{tpu_custom_call.1} parent=1 // pred_region
      %s82 = ssub.s32 3072, 3072
      %83 = vsyncadd [#allocation12], %s82
      %s84 = sshll.u32 [#allocation11], 4
      %s85 = int_to_ptr.vmem [resolvable:$true] %s84
      %90 = dma.hbm_to_vmem [thread:$0]  %s7, 3072, %s85, [#allocation12], 64, 64, 4
    $region33: #{tpu_custom_call.1} parent=1 // pred_fallthru
      _
    // Predicated region
    $region34: #{tpu_custom_call.1} parent=1 // pred_check
      _
    $region35: #{tpu_custom_call.1} parent=1 // pred_check_branch
      %92 = sbr.rel (0) target = $region37
    $region36: #{tpu_custom_call.1} parent=1 // pred_region
      _
    $region37: #{tpu_custom_call.1} parent=1 // pred_fallthru
      _
    // Predicated region
    $region38: #{tpu_custom_call.1} parent=1 // pred_check
      _
    $region39: #{tpu_custom_call.1} parent=1 // pred_check_branch
      %94 = sbr.rel (0) target = $region41
    $region40: #{tpu_custom_call.1} parent=1 // pred_region
      %95 = dma.done [#allocation3], 128
    $region41: #{tpu_custom_call.1} parent=1 // pred_fallthru
      _
    // Predicated region
    $region42: #{tpu_custom_call.1} parent=1 // pred_check
      _
    $region43: #{tpu_custom_call.1} parent=1 // pred_check_branch
      %97 = sbr.rel (0) target = $region45
    $region44: #{tpu_custom_call.1} parent=1 // pred_region
      %98 = dma.done [#allocation6], 2048
    $region45: #{tpu_custom_call.1} parent=1 // pred_fallthru
      _
    // Predicated region
    $region46: #{tpu_custom_call.1} parent=1 // pred_check
      _
    $region47: #{tpu_custom_call.1} parent=1 // pred_check_branch
      %100 = sbr.rel (0) target = $region49
    $region48: #{tpu_custom_call.1} parent=1 // pred_region
      %101 = dma.done [#allocation6], 64
    $region49: #{tpu_custom_call.1} parent=1 // pred_fallthru
      _
    // Predicated region
    $region50: #{tpu_custom_call.1} parent=1 // pred_check
      _
    $region51: #{tpu_custom_call.1} parent=1 // pred_check_branch
      %103 = sbr.rel (0) target = $region53
    $region52: #{tpu_custom_call.1} parent=1 // pred_region
      %104 = dma.done [#allocation9], 8192
    $region53: #{tpu_custom_call.1} parent=1 // pred_fallthru
      _
    // Predicated region
    $region54: #{tpu_custom_call.1} parent=1 // pred_check
      _
    $region55: #{tpu_custom_call.1} parent=1 // pred_check_branch
      %106 = sbr.rel (0) target = $region57
    $region56: #{tpu_custom_call.1} parent=1 // pred_region
      %107 = dma.done [#allocation9], 6144
    $region57: #{tpu_custom_call.1} parent=1 // pred_fallthru
      _
    // Predicated region
    $region58: #{tpu_custom_call.1} parent=1 // pred_check
      _
    $region59: #{tpu_custom_call.1} parent=1 // pred_check_branch
      %109 = sbr.rel (0) target = $region61
    $region60: #{tpu_custom_call.1} parent=1 // pred_region
      %110 = dma.done [#allocation12], 3072
    $region61: #{tpu_custom_call.1} parent=1 // pred_fallthru
      _
    %v112 = vld [vmem:[#allocation2] sm:$0xff]
    %v113 = vpack.c.bf16 %v112, %v112
    %v114 = vld [vmem:[#allocation5] sm:$0xff]
    %v115 = vld [vmem:[#allocation5 + $0x8] sm:$0xff]
    %v116 = vld [vmem:[#allocation5 + $0x10] sm:$0xff]
    %v117 = vld [vmem:[#allocation5 + $0x18] sm:$0xff]
    %v118 = vld [vmem:[#allocation5 + $0x20] sm:$0xff]
    %v119 = vld [vmem:[#allocation5 + $0x28] sm:$0xff]
    %v120 = vld [vmem:[#allocation5 + $0x30] sm:$0xff]
    %v121 = vld [vmem:[#allocation5 + $0x38] sm:$0xff]
    %v122 = vld [vmem:[#allocation5 + $0x40] sm:$0xff]
    %v123 = vld [vmem:[#allocation5 + $0x48] sm:$0xff]
    %v124 = vld [vmem:[#allocation5 + $0x50] sm:$0xff]
    %v125 = vld [vmem:[#allocation5 + $0x58] sm:$0xff]
    %v126 = vld [vmem:[#allocation5 + $0x60] sm:$0xff]
    %v127 = vld [vmem:[#allocation5 + $0x68] sm:$0xff]
    %v128 = vld [vmem:[#allocation5 + $0x70] sm:$0xff]
    %v129 = vld [vmem:[#allocation5 + $0x78] sm:$0xff]
    %v130 = vld [vmem:[#allocation7] sm:$0xf]
    %v131 = vunpack.c.l.bf16 %v130
    %v133 = vlaneseq
    %v134 = vshrl.u32 %v133, 7
    %v135 = vsub.s32 0, %v134
    %v136 = vrot.slane %v131, %v135
    %v137 = vlaneseq
    %v138 = vshrl.u32 %v137, 7
    %v139 = vsub.s32 2, %v138
    %v140 = vrot.slane %v131, %v139
    %v141 = vlaneseq
    %v142 = vshrl.u32 %v141, 7
    %v143 = vsub.s32 4, %v142
    %v144 = vrot.slane %v131, %v143
    %v145 = vlaneseq
    %v146 = vshrl.u32 %v145, 7
    %v147 = vsub.s32 6, %v146
    %v148 = vrot.slane %v131, %v147
    %v153 = vlaneseq
    %v154 = vshrl.u32 %v153, 7
    %v155 = vsub.s32 0, %v154
    %v156 = vrot.slane %v136, %v155
    %v157 = vlaneseq
    %v158 = vshrl.u32 %v157, 7
    %v159 = vsub.s32 0, %v158
    %v160 = vrot.slane %v140, %v159
    %v161 = vlaneseq
    %v162 = vshrl.u32 %v161, 7
    %v163 = vsub.s32 0, %v162
    %v164 = vrot.slane %v144, %v163
    %v165 = vlaneseq
    %v166 = vshrl.u32 %v165, 7
    %v167 = vsub.s32 0, %v166
    %v168 = vrot.slane %v148, %v167
    %v185 = vunpack.c.l.b16 %v114
    %v186 = vunpack.c.h.b16 %v114
    %v187 = vunpack.c.l.b16 %v115
    %v188 = vunpack.c.h.b16 %v115
    %v189 = vunpack.c.l.b16 %v116
    %v190 = vunpack.c.h.b16 %v116
    %v191 = vunpack.c.l.b16 %v117
    %v192 = vunpack.c.h.b16 %v117
    %v193 = vunpack.c.l.b16 %v118
    %v194 = vunpack.c.h.b16 %v118
    %v195 = vunpack.c.l.b16 %v119
    %v196 = vunpack.c.h.b16 %v119
    %v197 = vunpack.c.l.b16 %v120
    %v198 = vunpack.c.h.b16 %v120
    %v199 = vunpack.c.l.b16 %v121
    %v200 = vunpack.c.h.b16 %v121
    %v201 = vunpack.c.l.b16 %v122
    %v202 = vunpack.c.h.b16 %v122
    %v203 = vunpack.c.l.b16 %v123
    %v204 = vunpack.c.h.b16 %v123
    %v205 = vunpack.c.l.b16 %v124
    %v206 = vunpack.c.h.b16 %v124
    %v207 = vunpack.c.l.b16 %v125
    %v208 = vunpack.c.h.b16 %v125
    %v209 = vunpack.c.l.b16 %v126
    %v210 = vunpack.c.h.b16 %v126
    %v211 = vunpack.c.l.b16 %v127
    %v212 = vunpack.c.h.b16 %v127
    %v213 = vunpack.c.l.b16 %v128
    %v214 = vunpack.c.h.b16 %v128
    %v215 = vunpack.c.l.b16 %v129
    %v216 = vunpack.c.h.b16 %v129
    %v217 = vpack.c.b16 %v189, %v185
    %v218 = vpack.c.b16 %v190, %v186
    %v219 = vpack.c.b16 %v191, %v187
    %v220 = vpack.c.b16 %v192, %v188
    %v221 = vpack.c.b16 %v197, %v193
    %v222 = vpack.c.b16 %v198, %v194
    %v223 = vpack.c.b16 %v199, %v195
    %v224 = vpack.c.b16 %v200, %v196
    %v225 = vpack.c.b16 %v205, %v201
    %v226 = vpack.c.b16 %v206, %v202
    %v227 = vpack.c.b16 %v207, %v203
    %v228 = vpack.c.b16 %v208, %v204
    %v229 = vpack.c.b16 %v213, %v209
    %v230 = vpack.c.b16 %v214, %v210
    %v231 = vpack.c.b16 %v215, %v211
    %v232 = vpack.c.b16 %v216, %v212
    %vm249 = vcmask 523264
    %v251 = vsel %vm249, %v113, 0
    %253 = vmatprep.subr.bf16.mxu0 0
    %254 = vmatpush1.bf16.msra.mxu0 0
    %255 = vmatprep.subr.bf16.mxu0 0
    %256 = vmatpush1.bf16.msra.mxu0 0
    %257 = vmatprep.subr.bf16.mxu0 0
    %258 = vmatpush1.bf16.msra.mxu0 0
    %259 = vmatprep.subr.bf16.mxu0 0
    %260 = vmatpush1.bf16.msra.mxu0 0
    %261 = vmatprep.subr.bf16.mxu0 %v230
    %262 = vmatpush1.bf16.msra.mxu0 %v229
    %263 = vmatprep.subr.bf16.mxu0 %v226
    %264 = vmatpush1.bf16.msra.mxu0 %v225
    %265 = vmatprep.subr.bf16.mxu0 %v222
    %266 = vmatpush1.bf16.msra.mxu0 %v221
    %267 = vmatprep.subr.bf16.mxu0 %v218
    %268 = vmatpush1.bf16.msra.mxu0 %v217
    %269 = vmatprep.subr.bf16.mxu0 0
    %270 = vmatpush2.bf16.msra.mxu0 0
    %271 = vmatprep.subr.bf16.mxu0 0
    %272 = vmatpush2.bf16.msra.mxu0 0
    %273 = vmatprep.subr.bf16.mxu0 0
    %274 = vmatpush2.bf16.msra.mxu0 0
    %275 = vmatprep.subr.bf16.mxu0 0
    %276 = vmatpush2.bf16.msra.mxu0 0
    %277 = vmatprep.subr.bf16.mxu0 0
    %278 = vmatpush2.bf16.msra.mxu0 0
    %279 = vmatprep.subr.bf16.mxu0 0
    %280 = vmatpush2.bf16.msra.mxu0 0
    %281 = vmatprep.subr.bf16.mxu0 0
    %282 = vmatpush2.bf16.msra.mxu0 0
    %283 = vmatprep.subr.bf16.mxu0 0
    %284 = vmatpush2.bf16.msra.mxu0 0
    %285 = vmatprep.mubr.bf16.mxu0 0
    %286 = vmatmul.mubr.bf16.gmra.mxu0 %v251
    %v287 = vpop.f32.mrf.mxu0
    %v288 = vadd.f32 %v156, %v287
    %v289 = vpop.f32.mrf.mxu0
    %v290 = vadd.f32 %v160, %v289
    %v291 = vpop.f32.mrf.mxu0
    %v292 = vpop.f32.mrf.mxu0
    %293 = vdwg.mxu0
    %294 = vmatprep.subr.bf16.mxu0 0
    %295 = vmatpush1.bf16.msra.mxu0 0
    %296 = vmatprep.subr.bf16.mxu0 0
    %297 = vmatpush1.bf16.msra.mxu0 0
    %298 = vmatprep.subr.bf16.mxu0 0
    %299 = vmatpush1.bf16.msra.mxu0 0
    %300 = vmatprep.subr.bf16.mxu0 0
    %301 = vmatpush1.bf16.msra.mxu0 0
    %302 = vmatprep.subr.bf16.mxu0 %v232
    %303 = vmatpush1.bf16.msra.mxu0 %v231
    %304 = vmatprep.subr.bf16.mxu0 %v228
    %305 = vmatpush1.bf16.msra.mxu0 %v227
    %306 = vmatprep.subr.bf16.mxu0 %v224
    %307 = vmatpush1.bf16.msra.mxu0 %v223
    %308 = vmatprep.subr.bf16.mxu0 %v220
    %309 = vmatpush1.bf16.msra.mxu0 %v219
    %310 = vmatprep.subr.bf16.mxu0 0
    %311 = vmatpush2.bf16.msra.mxu0 0
    %312 = vmatprep.subr.bf16.mxu0 0
    %313 = vmatpush2.bf16.msra.mxu0 0
    %314 = vmatprep.subr.bf16.mxu0 0
    %315 = vmatpush2.bf16.msra.mxu0 0
    %316 = vmatprep.subr.bf16.mxu0 0
    %317 = vmatpush2.bf16.msra.mxu0 0
    %318 = vmatprep.subr.bf16.mxu0 0
    %319 = vmatpush2.bf16.msra.mxu0 0
    %320 = vmatprep.subr.bf16.mxu0 0
    %321 = vmatpush2.bf16.msra.mxu0 0
    %322 = vmatprep.subr.bf16.mxu0 0
    %323 = vmatpush2.bf16.msra.mxu0 0
    %324 = vmatprep.subr.bf16.mxu0 0
    %325 = vmatpush2.bf16.msra.mxu0 0
    %326 = vmatprep.mubr.bf16.mxu0 0
    %327 = vmatmul.mubr.bf16.gmra.mxu0 %v251
    %v328 = vpop.f32.mrf.mxu0
    %v329 = vadd.f32 %v164, %v328
    %v330 = vpop.f32.mrf.mxu0
    %v331 = vadd.f32 %v168, %v330
    %v332 = vpop.f32.mrf.mxu0
    %v333 = vpop.f32.mrf.mxu0
    %334 = vdwg.mxu0
    %v335 = vmax.f32 %v288, 0.0
    %v336 = vmax.f32 %v290, 0.0
    %v337 = vmax.f32 %v329, 0.0
    %v338 = vmax.f32 %v331, 0.0
    %v339 = vpack.c.bf16 %v335, %v335
    %v340 = vpack.c.bf16 %v336, %v336
    %v341 = vpack.c.bf16 %v337, %v337
    %v342 = vpack.c.bf16 %v338, %v338
    %v343 = vld [vmem:[#allocation8] sm:$0xff]
    %v344 = vld [vmem:[#allocation8 + $0x8] sm:$0xff]
    %v345 = vld [vmem:[#allocation8 + $0x10] sm:$0xff]
    %v346 = vld [vmem:[#allocation8 + $0x18] sm:$0xff]
    %v347 = vld [vmem:[#allocation8 + $0x20] sm:$0xff]
    %v348 = vld [vmem:[#allocation8 + $0x28] sm:$0xff]
    %v349 = vld [vmem:[#allocation8 + $0x30] sm:$0xff]
    %v350 = vld [vmem:[#allocation8 + $0x38] sm:$0xff]
    %v351 = vld [vmem:[#allocation8 + $0x40] sm:$0xff]
    %v352 = vld [vmem:[#allocation8 + $0x48] sm:$0xff]
    %v353 = vld [vmem:[#allocation8 + $0x50] sm:$0xff]
    %v354 = vld [vmem:[#allocation8 + $0x58] sm:$0xff]
    %v355 = vld [vmem:[#allocation8 + $0x60] sm:$0xff]
    %v356 = vld [vmem:[#allocation8 + $0x68] sm:$0xff]
    %v357 = vld [vmem:[#allocation8 + $0x70] sm:$0xff]
    %v358 = vld [vmem:[#allocation8 + $0x78] sm:$0xff]
    %v359 = vld [vmem:[#allocation8 + $0x80] sm:$0xff]
    %v360 = vld [vmem:[#allocation8 + $0x88] sm:$0xff]
    %v361 = vld [vmem:[#allocation8 + $0x90] sm:$0xff]
    %v362 = vld [vmem:[#allocation8 + $0x98] sm:$0xff]
    %v363 = vld [vmem:[#allocation8 + $0xa0] sm:$0xff]
    %v364 = vld [vmem:[#allocation8 + $0xa8] sm:$0xff]
    %v365 = vld [vmem:[#allocation8 + $0xb0] sm:$0xff]
    %v366 = vld [vmem:[#allocation8 + $0xb8] sm:$0xff]
    %v367 = vld [vmem:[#allocation8 + $0xc0] sm:$0xff]
    %v368 = vld [vmem:[#allocation8 + $0xc8] sm:$0xff]
    %v369 = vld [vmem:[#allocation8 + $0xd0] sm:$0xff]
    %v370 = vld [vmem:[#allocation8 + $0xd8] sm:$0xff]
    %v371 = vld [vmem:[#allocation8 + $0xe0] sm:$0xff]
    %v372 = vld [vmem:[#allocation8 + $0xe8] sm:$0xff]
    %v373 = vld [vmem:[#allocation8 + $0xf0] sm:$0xff]
    %v374 = vld [vmem:[#allocation8 + $0xf8] sm:$0xff]
    %v375 = vld [vmem:[#allocation8 + $0x100] sm:$0xff]
    %v376 = vld [vmem:[#allocation8 + $0x108] sm:$0xff]
    %v377 = vld [vmem:[#allocation8 + $0x110] sm:$0xff]
    %v378 = vld [vmem:[#allocation8 + $0x118] sm:$0xff]
    %v379 = vld [vmem:[#allocation8 + $0x120] sm:$0xff]
    %v380 = vld [vmem:[#allocation8 + $0x128] sm:$0xff]
    %v381 = vld [vmem:[#allocation8 + $0x130] sm:$0xff]
    %v382 = vld [vmem:[#allocation8 + $0x138] sm:$0xff]
    %v383 = vld [vmem:[#allocation8 + $0x140] sm:$0xff]
    %v384 = vld [vmem:[#allocation8 + $0x148] sm:$0xff]
    %v385 = vld [vmem:[#allocation8 + $0x150] sm:$0xff]
    %v386 = vld [vmem:[#allocation8 + $0x158] sm:$0xff]
    %v387 = vld [vmem:[#allocation8 + $0x160] sm:$0xff]
    %v388 = vld [vmem:[#allocation8 + $0x168] sm:$0xff]
    %v389 = vld [vmem:[#allocation8 + $0x170] sm:$0xff]
    %v390 = vld [vmem:[#allocation8 + $0x178] sm:$0xff]
    %v391 = vld [vmem:[#allocation8 + $0x180] sm:$0xff]
    %v392 = vld [vmem:[#allocation8 + $0x188] sm:$0xff]
    %v393 = vld [vmem:[#allocation8 + $0x190] sm:$0xff]
    %v394 = vld [vmem:[#allocation8 + $0x198] sm:$0xff]
    %v395 = vld [vmem:[#allocation8 + $0x1a0] sm:$0xff]
    %v396 = vld [vmem:[#allocation8 + $0x1a8] sm:$0xff]
    %v397 = vld [vmem:[#allocation8 + $0x1b0] sm:$0xff]
    %v398 = vld [vmem:[#allocation8 + $0x1b8] sm:$0xff]
    %v399 = vld [vmem:[#allocation8 + $0x1c0] sm:$0xff]
    %v400 = vld [vmem:[#allocation8 + $0x1c8] sm:$0xff]
    %v401 = vld [vmem:[#allocation8 + $0x1d0] sm:$0xff]
    %v402 = vld [vmem:[#allocation8 + $0x1d8] sm:$0xff]
    %v403 = vld [vmem:[#allocation8 + $0x1e0] sm:$0xff]
    %v404 = vld [vmem:[#allocation8 + $0x1e8] sm:$0xff]
    %v405 = vld [vmem:[#allocation8 + $0x1f0] sm:$0xff]
    %v406 = vld [vmem:[#allocation8 + $0x1f8] sm:$0xff]
    %v407 = vld [vmem:[%s4] sm:$0x3]
    %v408 = vunpack.c.l.bf16 %v407
    %v410 = vlaneseq
    %v411 = vshrl.u32 %v410, 7
    %v412 = vsub.s32 0, %v411
    %v413 = vrot.slane %v408, %v412
    %v414 = vlaneseq
    %v415 = vshrl.u32 %v414, 7
    %v416 = vsub.s32 2, %v415
    %v417 = vrot.slane %v408, %v416
    %v420 = vlaneseq
    %v421 = vshrl.u32 %v420, 7
    %v422 = vsub.s32 0, %v421
    %v423 = vrot.slane %v413, %v422
    %v424 = vlaneseq
    %v425 = vshrl.u32 %v424, 7
    %v426 = vsub.s32 0, %v425
    %v427 = vrot.slane %v417, %v426
    %v492 = vunpack.c.l.b16 %v343
    %v493 = vunpack.c.h.b16 %v343
    %v494 = vunpack.c.l.b16 %v344
    %v495 = vunpack.c.h.b16 %v344
    %v496 = vunpack.c.l.b16 %v345
    %v497 = vunpack.c.h.b16 %v345
    %v498 = vunpack.c.l.b16 %v346
    %v499 = vunpack.c.h.b16 %v346
    %v500 = vunpack.c.l.b16 %v347
    %v501 = vunpack.c.h.b16 %v347
    %v502 = vunpack.c.l.b16 %v348
    %v503 = vunpack.c.h.b16 %v348
    %v504 = vunpack.c.l.b16 %v349
    %v505 = vunpack.c.h.b16 %v349
    %v506 = vunpack.c.l.b16 %v350
    %v507 = vunpack.c.h.b16 %v350
    %v508 = vunpack.c.l.b16 %v351
    %v509 = vunpack.c.h.b16 %v351
    %v510 = vunpack.c.l.b16 %v352
    %v511 = vunpack.c.h.b16 %v352
    %v512 = vunpack.c.l.b16 %v353
    %v513 = vunpack.c.h.b16 %v353
    %v514 = vunpack.c.l.b16 %v354
    %v515 = vunpack.c.h.b16 %v354
    %v516 = vunpack.c.l.b16 %v355
    %v517 = vunpack.c.h.b16 %v355
    %v518 = vunpack.c.l.b16 %v356
    %v519 = vunpack.c.h.b16 %v356
    %v520 = vunpack.c.l.b16 %v357
    %v521 = vunpack.c.h.b16 %v357
    %v522 = vunpack.c.l.b16 %v358
    %v523 = vunpack.c.h.b16 %v358
    %v524 = vunpack.c.l.b16 %v359
    %v525 = vunpack.c.h.b16 %v359
    %v526 = vunpack.c.l.b16 %v360
    %v527 = vunpack.c.h.b16 %v360
    %v528 = vunpack.c.l.b16 %v361
    %v529 = vunpack.c.h.b16 %v361
    %v530 = vunpack.c.l.b16 %v362
    %v531 = vunpack.c.h.b16 %v362
    %v532 = vunpack.c.l.b16 %v363
    %v533 = vunpack.c.h.b16 %v363
    %v534 = vunpack.c.l.b16 %v364
    %v535 = vunpack.c.h.b16 %v364
    %v536 = vunpack.c.l.b16 %v365
    %v537 = vunpack.c.h.b16 %v365
    %v538 = vunpack.c.l.b16 %v366
    %v539 = vunpack.c.h.b16 %v366
    %v540 = vunpack.c.l.b16 %v367
    %v541 = vunpack.c.h.b16 %v367
    %v542 = vunpack.c.l.b16 %v368
    %v543 = vunpack.c.h.b16 %v368
    %v544 = vunpack.c.l.b16 %v369
    %v545 = vunpack.c.h.b16 %v369
    %v546 = vunpack.c.l.b16 %v370
    %v547 = vunpack.c.h.b16 %v370
    %v548 = vunpack.c.l.b16 %v371
    %v549 = vunpack.c.h.b16 %v371
    %v550 = vunpack.c.l.b16 %v372
    %v551 = vunpack.c.h.b16 %v372
    %v552 = vunpack.c.l.b16 %v373
    %v553 = vunpack.c.h.b16 %v373
    %v554 = vunpack.c.l.b16 %v374
    %v555 = vunpack.c.h.b16 %v374
    %v556 = vunpack.c.l.b16 %v375
    %v557 = vunpack.c.h.b16 %v375
    %v558 = vunpack.c.l.b16 %v376
    %v559 = vunpack.c.h.b16 %v376
    %v560 = vunpack.c.l.b16 %v377
    %v561 = vunpack.c.h.b16 %v377
    %v562 = vunpack.c.l.b16 %v378
    %v563 = vunpack.c.h.b16 %v378
    %v564 = vunpack.c.l.b16 %v379
    %v565 = vunpack.c.h.b16 %v379
    %v566 = vunpack.c.l.b16 %v380
    %v567 = vunpack.c.h.b16 %v380
    %v568 = vunpack.c.l.b16 %v381
    %v569 = vunpack.c.h.b16 %v381
    %v570 = vunpack.c.l.b16 %v382
    %v571 = vunpack.c.h.b16 %v382
    %v572 = vunpack.c.l.b16 %v383
    %v573 = vunpack.c.h.b16 %v383
    %v574 = vunpack.c.l.b16 %v384
    %v575 = vunpack.c.h.b16 %v384
    %v576 = vunpack.c.l.b16 %v385
    %v577 = vunpack.c.h.b16 %v385
    %v578 = vunpack.c.l.b16 %v386
    %v579 = vunpack.c.h.b16 %v386
    %v580 = vunpack.c.l.b16 %v387
    %v581 = vunpack.c.h.b16 %v387
    %v582 = vunpack.c.l.b16 %v388
    %v583 = vunpack.c.h.b16 %v388
    %v584 = vunpack.c.l.b16 %v389
    %v585 = vunpack.c.h.b16 %v389
    %v586 = vunpack.c.l.b16 %v390
    %v587 = vunpack.c.h.b16 %v390
    %v588 = vunpack.c.l.b16 %v391
    %v589 = vunpack.c.h.b16 %v391
    %v590 = vunpack.c.l.b16 %v392
    %v591 = vunpack.c.h.b16 %v392
    %v592 = vunpack.c.l.b16 %v393
    %v593 = vunpack.c.h.b16 %v393
    %v594 = vunpack.c.l.b16 %v394
    %v595 = vunpack.c.h.b16 %v394
    %v596 = vunpack.c.l.b16 %v395
    %v597 = vunpack.c.h.b16 %v395
    %v598 = vunpack.c.l.b16 %v396
    %v599 = vunpack.c.h.b16 %v396
    %v600 = vunpack.c.l.b16 %v397
    %v601 = vunpack.c.h.b16 %v397
    %v602 = vunpack.c.l.b16 %v398
    %v603 = vunpack.c.h.b16 %v398
    %v604 = vunpack.c.l.b16 %v399
    %v605 = vunpack.c.h.b16 %v399
    %v606 = vunpack.c.l.b16 %v400
    %v607 = vunpack.c.h.b16 %v400
    %v608 = vunpack.c.l.b16 %v401
    %v609 = vunpack.c.h.b16 %v401
    %v610 = vunpack.c.l.b16 %v402
    %v611 = vunpack.c.h.b16 %v402
    %v612 = vunpack.c.l.b16 %v403
    %v613 = vunpack.c.h.b16 %v403
    %v614 = vunpack.c.l.b16 %v404
    %v615 = vunpack.c.h.b16 %v404
    %v616 = vunpack.c.l.b16 %v405
    %v617 = vunpack.c.h.b16 %v405
    %v618 = vunpack.c.l.b16 %v406
    %v619 = vunpack.c.h.b16 %v406
    %v620 = vpack.c.b16 %v494, %v492
    %v621 = vpack.c.b16 %v495, %v493
    %v622 = vpack.c.b16 %v498, %v496
    %v623 = vpack.c.b16 %v499, %v497
    %v624 = vpack.c.b16 %v502, %v500
    %v625 = vpack.c.b16 %v503, %v501
    %v626 = vpack.c.b16 %v506, %v504
    %v627 = vpack.c.b16 %v507, %v505
    %v628 = vpack.c.b16 %v510, %v508
    %v629 = vpack.c.b16 %v511, %v509
    %v630 = vpack.c.b16 %v514, %v512
    %v631 = vpack.c.b16 %v515, %v513
    %v632 = vpack.c.b16 %v518, %v516
    %v633 = vpack.c.b16 %v519, %v517
    %v634 = vpack.c.b16 %v522, %v520
    %v635 = vpack.c.b16 %v523, %v521
    %v636 = vpack.c.b16 %v526, %v524
    %v637 = vpack.c.b16 %v527, %v525
    %v638 = vpack.c.b16 %v530, %v528
    %v639 = vpack.c.b16 %v531, %v529
    %v640 = vpack.c.b16 %v534, %v532
    %v641 = vpack.c.b16 %v535, %v533
    %v642 = vpack.c.b16 %v538, %v536
    %v643 = vpack.c.b16 %v539, %v537
    %v644 = vpack.c.b16 %v542, %v540
    %v645 = vpack.c.b16 %v543, %v541
    %v646 = vpack.c.b16 %v546, %v544
    %v647 = vpack.c.b16 %v547, %v545
    %v648 = vpack.c.b16 %v550, %v548
    %v649 = vpack.c.b16 %v551, %v549
    %v650 = vpack.c.b16 %v554, %v552
    %v651 = vpack.c.b16 %v555, %v553
    %v652 = vpack.c.b16 %v558, %v556
    %v653 = vpack.c.b16 %v559, %v557
    %v654 = vpack.c.b16 %v562, %v560
    %v655 = vpack.c.b16 %v563, %v561
    %v656 = vpack.c.b16 %v566, %v564
    %v657 = vpack.c.b16 %v567, %v565
    %v658 = vpack.c.b16 %v570, %v568
    %v659 = vpack.c.b16 %v571, %v569
    %v660 = vpack.c.b16 %v574, %v572
    %v661 = vpack.c.b16 %v575, %v573
    %v662 = vpack.c.b16 %v578, %v576
    %v663 = vpack.c.b16 %v579, %v577
    %v664 = vpack.c.b16 %v582, %v580
    %v665 = vpack.c.b16 %v583, %v581
    %v666 = vpack.c.b16 %v586, %v584
    %v667 = vpack.c.b16 %v587, %v585
    %v668 = vpack.c.b16 %v590, %v588
    %v669 = vpack.c.b16 %v591, %v589
    %v670 = vpack.c.b16 %v594, %v592
    %v671 = vpack.c.b16 %v595, %v593
    %v672 = vpack.c.b16 %v598, %v596
    %v673 = vpack.c.b16 %v599, %v597
    %v674 = vpack.c.b16 %v602, %v600
    %v675 = vpack.c.b16 %v603, %v601
    %v676 = vpack.c.b16 %v606, %v604
    %v677 = vpack.c.b16 %v607, %v605
    %v678 = vpack.c.b16 %v610, %v608
    %v679 = vpack.c.b16 %v611, %v609
    %v680 = vpack.c.b16 %v614, %v612
    %v681 = vpack.c.b16 %v615, %v613
    %v682 = vpack.c.b16 %v618, %v616
    %v683 = vpack.c.b16 %v619, %v617
    %748 = vmatprep.subr.bf16.mxu0 %v635
    %749 = vmatpush1.bf16.msra.mxu0 %v634
    %750 = vmatprep.subr.bf16.mxu0 %v633
    %751 = vmatpush1.bf16.msra.mxu0 %v632
    %752 = vmatprep.subr.bf16.mxu0 %v631
    %753 = vmatpush1.bf16.msra.mxu0 %v630
    %754 = vmatprep.subr.bf16.mxu0 %v629
    %755 = vmatpush1.bf16.msra.mxu0 %v628
    %756 = vmatprep.subr.bf16.mxu0 %v627
    %757 = vmatpush1.bf16.msra.mxu0 %v626
    %758 = vmatprep.subr.bf16.mxu0 %v625
    %759 = vmatpush1.bf16.msra.mxu0 %v624
    %760 = vmatprep.subr.bf16.mxu0 %v623
    %761 = vmatpush1.bf16.msra.mxu0 %v622
    %762 = vmatprep.subr.bf16.mxu0 %v621
    %763 = vmatpush1.bf16.msra.mxu0 %v620
    %764 = vmatprep.subr.bf16.mxu0 %v651
    %765 = vmatpush2.bf16.msra.mxu0 %v650
    %766 = vmatprep.subr.bf16.mxu0 %v649
    %767 = vmatpush2.bf16.msra.mxu0 %v648
    %768 = vmatprep.subr.bf16.mxu0 %v647
    %769 = vmatpush2.bf16.msra.mxu0 %v646
    %770 = vmatprep.subr.bf16.mxu0 %v645
    %771 = vmatpush2.bf16.msra.mxu0 %v644
    %772 = vmatprep.subr.bf16.mxu0 %v643
    %773 = vmatpush2.bf16.msra.mxu0 %v642
    %774 = vmatprep.subr.bf16.mxu0 %v641
    %775 = vmatpush2.bf16.msra.mxu0 %v640
    %776 = vmatprep.subr.bf16.mxu0 %v639
    %777 = vmatpush2.bf16.msra.mxu0 %v638
    %778 = vmatprep.subr.bf16.mxu0 %v637
    %779 = vmatpush2.bf16.msra.mxu0 %v636
    %780 = vmatprep.mubr.bf16.mxu0 %v340
    %781 = vmatmul.mubr.bf16.gmra.mxu0 %v339
    %v782 = vpop.f32.mrf.mxu0
    %v783 = vadd.f32 %v423, %v782
    %v784 = vpop.f32.mrf.mxu0
    %v785 = vadd.f32 %v427, %v784
    %v786 = vpop.f32.mrf.mxu0
    %v787 = vpop.f32.mrf.mxu0
    %788 = vdwg.mxu0
    %789 = vmatprep.subr.bf16.mxu0 %v667
    %790 = vmatpush1.bf16.msra.mxu0 %v666
    %791 = vmatprep.subr.bf16.mxu0 %v665
    %792 = vmatpush1.bf16.msra.mxu0 %v664
    %793 = vmatprep.subr.bf16.mxu0 %v663
    %794 = vmatpush1.bf16.msra.mxu0 %v662
    %795 = vmatprep.subr.bf16.mxu0 %v661
    %796 = vmatpush1.bf16.msra.mxu0 %v660
    %797 = vmatprep.subr.bf16.mxu0 %v659
    %798 = vmatpush1.bf16.msra.mxu0 %v658
    %799 = vmatprep.subr.bf16.mxu0 %v657
    %800 = vmatpush1.bf16.msra.mxu0 %v656
    %801 = vmatprep.subr.bf16.mxu0 %v655
    %802 = vmatpush1.bf16.msra.mxu0 %v654
    %803 = vmatprep.subr.bf16.mxu0 %v653
    %804 = vmatpush1.bf16.msra.mxu0 %v652
    %805 = vmatprep.subr.bf16.mxu0 %v683
    %806 = vmatpush2.bf16.msra.mxu0 %v682
    %807 = vmatprep.subr.bf16.mxu0 %v681
    %808 = vmatpush2.bf16.msra.mxu0 %v680
    %809 = vmatprep.subr.bf16.mxu0 %v679
    %810 = vmatpush2.bf16.msra.mxu0 %v678
    %811 = vmatprep.subr.bf16.mxu0 %v677
    %812 = vmatpush2.bf16.msra.mxu0 %v676
    %813 = vmatprep.subr.bf16.mxu0 %v675
    %814 = vmatpush2.bf16.msra.mxu0 %v674
    %815 = vmatprep.subr.bf16.mxu0 %v673
    %816 = vmatpush2.bf16.msra.mxu0 %v672
    %817 = vmatprep.subr.bf16.mxu0 %v671
    %818 = vmatpush2.bf16.msra.mxu0 %v670
    %819 = vmatprep.subr.bf16.mxu0 %v669
    %820 = vmatpush2.bf16.msra.mxu0 %v668
    %821 = vmatprep.mubr.bf16.mxu0 %v342
    %822 = vmatmul.mubr.bf16.gmra.mxu0 %v341
    %v823 = vpop.f32.mrf.mxu0
    %v824 = vadd.f32 %v783, %v823
    %v825 = vpop.f32.mrf.mxu0
    %v826 = vadd.f32 %v785, %v825
    %v827 = vpop.f32.mrf.mxu0
    %v828 = vpop.f32.mrf.mxu0
    %829 = vdwg.mxu0
    %v830 = vmax.f32 %v824, 0.0
    %v831 = vmax.f32 %v826, 0.0
    %v832 = vpack.c.bf16 %v830, %v830
    %v833 = vpack.c.bf16 %v831, %v831
    %v834 = vld [vmem:[#allocation10] sm:$0xff]
    %v835 = vld [vmem:[#allocation10 + $0x8] sm:$0xf]
    %v836 = vld [vmem:[#allocation10 + $0xc] sm:$0xff]
    %v837 = vld [vmem:[#allocation10 + $0x14] sm:$0xf]
    %v838 = vld [vmem:[#allocation10 + $0x18] sm:$0xff]
    %v839 = vld [vmem:[#allocation10 + $0x20] sm:$0xf]
    %v840 = vld [vmem:[#allocation10 + $0x24] sm:$0xff]
    %v841 = vld [vmem:[#allocation10 + $0x2c] sm:$0xf]
    %v842 = vld [vmem:[#allocation10 + $0x30] sm:$0xff]
    %v843 = vld [vmem:[#allocation10 + $0x38] sm:$0xf]
    %v844 = vld [vmem:[#allocation10 + $0x3c] sm:$0xff]
    %v845 = vld [vmem:[#allocation10 + $0x44] sm:$0xf]
    %v846 = vld [vmem:[#allocation10 + $0x48] sm:$0xff]
    %v847 = vld [vmem:[#allocation10 + $0x50] sm:$0xf]
    %v848 = vld [vmem:[#allocation10 + $0x54] sm:$0xff]
    %v849 = vld [vmem:[#allocation10 + $0x5c] sm:$0xf]
    %v850 = vld [vmem:[#allocation10 + $0x60] sm:$0xff]
    %v851 = vld [vmem:[#allocation10 + $0x68] sm:$0xf]
    %v852 = vld [vmem:[#allocation10 + $0x6c] sm:$0xff]
    %v853 = vld [vmem:[#allocation10 + $0x74] sm:$0xf]
    %v854 = vld [vmem:[#allocation10 + $0x78] sm:$0xff]
    %v855 = vld [vmem:[#allocation10 + $0x80] sm:$0xf]
    %v856 = vld [vmem:[#allocation10 + $0x84] sm:$0xff]
    %v857 = vld [vmem:[#allocation10 + $0x8c] sm:$0xf]
    %v858 = vld [vmem:[#allocation10 + $0x90] sm:$0xff]
    %v859 = vld [vmem:[#allocation10 + $0x98] sm:$0xf]
    %v860 = vld [vmem:[#allocation10 + $0x9c] sm:$0xff]
    %v861 = vld [vmem:[#allocation10 + $0xa4] sm:$0xf]
    %v862 = vld [vmem:[#allocation10 + $0xa8] sm:$0xff]
    %v863 = vld [vmem:[#allocation10 + $0xb0] sm:$0xf]
    %v864 = vld [vmem:[#allocation10 + $0xb4] sm:$0xff]
    %v865 = vld [vmem:[#allocation10 + $0xbc] sm:$0xf]
    %v866 = vld [vmem:[#allocation10 + $0xc0] sm:$0xff]
    %v867 = vld [vmem:[#allocation10 + $0xc8] sm:$0xf]
    %v868 = vld [vmem:[#allocation10 + $0xcc] sm:$0xff]
    %v869 = vld [vmem:[#allocation10 + $0xd4] sm:$0xf]
    %v870 = vld [vmem:[#allocation10 + $0xd8] sm:$0xff]
    %v871 = vld [vmem:[#allocation10 + $0xe0] sm:$0xf]
    %v872 = vld [vmem:[#allocation10 + $0xe4] sm:$0xff]
    %v873 = vld [vmem:[#allocation10 + $0xec] sm:$0xf]
    %v874 = vld [vmem:[#allocation10 + $0xf0] sm:$0xff]
    %v875 = vld [vmem:[#allocation10 + $0xf8] sm:$0xf]
    %v876 = vld [vmem:[#allocation10 + $0xfc] sm:$0xff]
    %v877 = vld [vmem:[#allocation10 + $0x104] sm:$0xf]
    %v878 = vld [vmem:[#allocation10 + $0x108] sm:$0xff]
    %v879 = vld [vmem:[#allocation10 + $0x110] sm:$0xf]
    %v880 = vld [vmem:[#allocation10 + $0x114] sm:$0xff]
    %v881 = vld [vmem:[#allocation10 + $0x11c] sm:$0xf]
    %v882 = vld [vmem:[#allocation10 + $0x120] sm:$0xff]
    %v883 = vld [vmem:[#allocation10 + $0x128] sm:$0xf]
    %v884 = vld [vmem:[#allocation10 + $0x12c] sm:$0xff]
    %v885 = vld [vmem:[#allocation10 + $0x134] sm:$0xf]
    %v886 = vld [vmem:[#allocation10 + $0x138] sm:$0xff]
    %v887 = vld [vmem:[#allocation10 + $0x140] sm:$0xf]
    %v888 = vld [vmem:[#allocation10 + $0x144] sm:$0xff]
    %v889 = vld [vmem:[#allocation10 + $0x14c] sm:$0xf]
    %v890 = vld [vmem:[#allocation10 + $0x150] sm:$0xff]
    %v891 = vld [vmem:[#allocation10 + $0x158] sm:$0xf]
    %v892 = vld [vmem:[#allocation10 + $0x15c] sm:$0xff]
    %v893 = vld [vmem:[#allocation10 + $0x164] sm:$0xf]
    %v894 = vld [vmem:[#allocation10 + $0x168] sm:$0xff]
    %v895 = vld [vmem:[#allocation10 + $0x170] sm:$0xf]
    %v896 = vld [vmem:[#allocation10 + $0x174] sm:$0xff]
    %v897 = vld [vmem:[#allocation10 + $0x17c] sm:$0xf]
    %v898 = vld [vmem:[%s6] sm:$0x7]
    %v899 = vunpack.c.l.bf16 %v898
    %v901 = vlaneseq
    %v902 = vshrl.u32 %v901, 7
    %v903 = vsub.s32 0, %v902
    %v904 = vrot.slane %v899, %v903
    %v905 = vlaneseq
    %v906 = vshrl.u32 %v905, 7
    %v907 = vsub.s32 2, %v906
    %v908 = vrot.slane %v899, %v907
    %v909 = vlaneseq
    %v910 = vshrl.u32 %v909, 7
    %v911 = vsub.s32 4, %v910
    %v912 = vrot.slane %v899, %v911
    %v916 = vlaneseq
    %v917 = vshrl.u32 %v916, 7
    %v918 = vsub.s32 0, %v917
    %v919 = vrot.slane %v904, %v918
    %v920 = vlaneseq
    %v921 = vshrl.u32 %v920, 7
    %v922 = vsub.s32 0, %v921
    %v923 = vrot.slane %v908, %v922
    %v924 = vlaneseq
    %v925 = vshrl.u32 %v924, 7
    %v926 = vsub.s32 0, %v925
    %v927 = vrot.slane %v912, %v926
    %v992 = vunpack.c.l.b16 %v834
    %v993 = vunpack.c.h.b16 %v834
    %v994 = vunpack.c.l.b16 %v835
    %v995 = vunpack.c.l.b16 %v836
    %v996 = vunpack.c.h.b16 %v836
    %v997 = vunpack.c.l.b16 %v837
    %v998 = vunpack.c.l.b16 %v838
    %v999 = vunpack.c.h.b16 %v838
    %v1000 = vunpack.c.l.b16 %v839
    %v1001 = vunpack.c.l.b16 %v840
    %v1002 = vunpack.c.h.b16 %v840
    %v1003 = vunpack.c.l.b16 %v841
    %v1004 = vunpack.c.l.b16 %v842
    %v1005 = vunpack.c.h.b16 %v842
    %v1006 = vunpack.c.l.b16 %v843
    %v1007 = vunpack.c.l.b16 %v844
    %v1008 = vunpack.c.h.b16 %v844
    %v1009 = vunpack.c.l.b16 %v845
    %v1010 = vunpack.c.l.b16 %v846
    %v1011 = vunpack.c.h.b16 %v846
    %v1012 = vunpack.c.l.b16 %v847
    %v1013 = vunpack.c.l.b16 %v848
    %v1014 = vunpack.c.h.b16 %v848
    %v1015 = vunpack.c.l.b16 %v849
    %v1016 = vunpack.c.l.b16 %v850
    %v1017 = vunpack.c.h.b16 %v850
    %v1018 = vunpack.c.l.b16 %v851
    %v1019 = vunpack.c.l.b16 %v852
    %v1020 = vunpack.c.h.b16 %v852
    %v1021 = vunpack.c.l.b16 %v853
    %v1022 = vunpack.c.l.b16 %v854
    %v1023 = vunpack.c.h.b16 %v854
    %v1024 = vunpack.c.l.b16 %v855
    %v1025 = vunpack.c.l.b16 %v856
    %v1026 = vunpack.c.h.b16 %v856
    %v1027 = vunpack.c.l.b16 %v857
    %v1028 = vunpack.c.l.b16 %v858
    %v1029 = vunpack.c.h.b16 %v858
    %v1030 = vunpack.c.l.b16 %v859
    %v1031 = vunpack.c.l.b16 %v860
    %v1032 = vunpack.c.h.b16 %v860
    %v1033 = vunpack.c.l.b16 %v861
    %v1034 = vunpack.c.l.b16 %v862
    %v1035 = vunpack.c.h.b16 %v862
    %v1036 = vunpack.c.l.b16 %v863
    %v1037 = vunpack.c.l.b16 %v864
    %v1038 = vunpack.c.h.b16 %v864
    %v1039 = vunpack.c.l.b16 %v865
    %v1040 = vunpack.c.l.b16 %v866
    %v1041 = vunpack.c.h.b16 %v866
    %v1042 = vunpack.c.l.b16 %v867
    %v1043 = vunpack.c.l.b16 %v868
    %v1044 = vunpack.c.h.b16 %v868
    %v1045 = vunpack.c.l.b16 %v869
    %v1046 = vunpack.c.l.b16 %v870
    %v1047 = vunpack.c.h.b16 %v870
    %v1048 = vunpack.c.l.b16 %v871
    %v1049 = vunpack.c.l.b16 %v872
    %v1050 = vunpack.c.h.b16 %v872
    %v1051 = vunpack.c.l.b16 %v873
    %v1052 = vunpack.c.l.b16 %v874
    %v1053 = vunpack.c.h.b16 %v874
    %v1054 = vunpack.c.l.b16 %v875
    %v1055 = vunpack.c.l.b16 %v876
    %v1056 = vunpack.c.h.b16 %v876
    %v1057 = vunpack.c.l.b16 %v877
    %v1058 = vunpack.c.l.b16 %v878
    %v1059 = vunpack.c.h.b16 %v878
    %v1060 = vunpack.c.l.b16 %v879
    %v1061 = vunpack.c.l.b16 %v880
    %v1062 = vunpack.c.h.b16 %v880
    %v1063 = vunpack.c.l.b16 %v881
    %v1064 = vunpack.c.l.b16 %v882
    %v1065 = vunpack.c.h.b16 %v882
    %v1066 = vunpack.c.l.b16 %v883
    %v1067 = vunpack.c.l.b16 %v884
    %v1068 = vunpack.c.h.b16 %v884
    %v1069 = vunpack.c.l.b16 %v885
    %v1070 = vunpack.c.l.b16 %v886
    %v1071 = vunpack.c.h.b16 %v886
    %v1072 = vunpack.c.l.b16 %v887
    %v1073 = vunpack.c.l.b16 %v888
    %v1074 = vunpack.c.h.b16 %v888
    %v1075 = vunpack.c.l.b16 %v889
    %v1076 = vunpack.c.l.b16 %v890
    %v1077 = vunpack.c.h.b16 %v890
    %v1078 = vunpack.c.l.b16 %v891
    %v1079 = vunpack.c.l.b16 %v892
    %v1080 = vunpack.c.h.b16 %v892
    %v1081 = vunpack.c.l.b16 %v893
    %v1082 = vunpack.c.l.b16 %v894
    %v1083 = vunpack.c.h.b16 %v894
    %v1084 = vunpack.c.l.b16 %v895
    %v1085 = vunpack.c.l.b16 %v896
    %v1086 = vunpack.c.h.b16 %v896
    %v1087 = vunpack.c.l.b16 %v897
    %v1088 = vpack.c.b16 %v995, %v992
    %v1089 = vpack.c.b16 %v996, %v993
    %v1090 = vpack.c.b16 %v997, %v994
    %v1091 = vpack.c.b16 %v1001, %v998
    %v1092 = vpack.c.b16 %v1002, %v999
    %v1093 = vpack.c.b16 %v1003, %v1000
    %v1094 = vpack.c.b16 %v1007, %v1004
    %v1095 = vpack.c.b16 %v1008, %v1005
    %v1096 = vpack.c.b16 %v1009, %v1006
    %v1097 = vpack.c.b16 %v1013, %v1010
    %v1098 = vpack.c.b16 %v1014, %v1011
    %v1099 = vpack.c.b16 %v1015, %v1012
    %v1100 = vpack.c.b16 %v1019, %v1016
    %v1101 = vpack.c.b16 %v1020, %v1017
    %v1102 = vpack.c.b16 %v1021, %v1018
    %v1103 = vpack.c.b16 %v1025, %v1022
    %v1104 = vpack.c.b16 %v1026, %v1023
    %v1105 = vpack.c.b16 %v1027, %v1024
    %v1106 = vpack.c.b16 %v1031, %v1028
    %v1107 = vpack.c.b16 %v1032, %v1029
    %v1108 = vpack.c.b16 %v1033, %v1030
    %v1109 = vpack.c.b16 %v1037, %v1034
    %v1110 = vpack.c.b16 %v1038, %v1035
    %v1111 = vpack.c.b16 %v1039, %v1036
    %v1112 = vpack.c.b16 %v1043, %v1040
    %v1113 = vpack.c.b16 %v1044, %v1041
    %v1114 = vpack.c.b16 %v1045, %v1042
    %v1115 = vpack.c.b16 %v1049, %v1046
    %v1116 = vpack.c.b16 %v1050, %v1047
    %v1117 = vpack.c.b16 %v1051, %v1048
    %v1118 = vpack.c.b16 %v1055, %v1052
    %v1119 = vpack.c.b16 %v1056, %v1053
    %v1120 = vpack.c.b16 %v1057, %v1054
    %v1121 = vpack.c.b16 %v1061, %v1058
    %v1122 = vpack.c.b16 %v1062, %v1059
    %v1123 = vpack.c.b16 %v1063, %v1060
    %v1124 = vpack.c.b16 %v1067, %v1064
    %v1125 = vpack.c.b16 %v1068, %v1065
    %v1126 = vpack.c.b16 %v1069, %v1066
    %v1127 = vpack.c.b16 %v1073, %v1070
    %v1128 = vpack.c.b16 %v1074, %v1071
    %v1129 = vpack.c.b16 %v1075, %v1072
    %v1130 = vpack.c.b16 %v1079, %v1076
    %v1131 = vpack.c.b16 %v1080, %v1077
    %v1132 = vpack.c.b16 %v1081, %v1078
    %v1133 = vpack.c.b16 %v1085, %v1082
    %v1134 = vpack.c.b16 %v1086, %v1083
    %v1135 = vpack.c.b16 %v1087, %v1084
    %1184 = vmatprep.subr.bf16.mxu0 %v1110
    %1185 = vmatpush1.bf16.msra.mxu0 %v1109
    %1186 = vmatprep.subr.bf16.mxu0 %v1107
    %1187 = vmatpush1.bf16.msra.mxu0 %v1106
    %1188 = vmatprep.subr.bf16.mxu0 %v1104
    %1189 = vmatpush1.bf16.msra.mxu0 %v1103
    %1190 = vmatprep.subr.bf16.mxu0 %v1101
    %1191 = vmatpush1.bf16.msra.mxu0 %v1100
    %1192 = vmatprep.subr.bf16.mxu0 %v1098
    %1193 = vmatpush1.bf16.msra.mxu0 %v1097
    %1194 = vmatprep.subr.bf16.mxu0 %v1095
    %1195 = vmatpush1.bf16.msra.mxu0 %v1094
    %1196 = vmatprep.subr.bf16.mxu0 %v1092
    %1197 = vmatpush1.bf16.msra.mxu0 %v1091
    %1198 = vmatprep.subr.bf16.mxu0 %v1089
    %1199 = vmatpush1.bf16.msra.mxu0 %v1088
    %1200 = vmatprep.subr.bf16.mxu0 %v1134
    %1201 = vmatpush2.bf16.msra.mxu0 %v1133
    %1202 = vmatprep.subr.bf16.mxu0 %v1131
    %1203 = vmatpush2.bf16.msra.mxu0 %v1130
    %1204 = vmatprep.subr.bf16.mxu0 %v1128
    %1205 = vmatpush2.bf16.msra.mxu0 %v1127
    %1206 = vmatprep.subr.bf16.mxu0 %v1125
    %1207 = vmatpush2.bf16.msra.mxu0 %v1124
    %1208 = vmatprep.subr.bf16.mxu0 %v1122
    %1209 = vmatpush2.bf16.msra.mxu0 %v1121
    %1210 = vmatprep.subr.bf16.mxu0 %v1119
    %1211 = vmatpush2.bf16.msra.mxu0 %v1118
    %1212 = vmatprep.subr.bf16.mxu0 %v1116
    %1213 = vmatpush2.bf16.msra.mxu0 %v1115
    %1214 = vmatprep.subr.bf16.mxu0 %v1113
    %1215 = vmatpush2.bf16.msra.mxu0 %v1112
    %1216 = vmatprep.mubr.bf16.mxu0 %v833
    %1217 = vmatmul.mubr.bf16.gmra.mxu0 %v832
    %v1218 = vpop.f32.mrf.mxu0
    %v1219 = vadd.f32 %v919, %v1218
    %v1220 = vpop.f32.mrf.mxu0
    %v1221 = vadd.f32 %v923, %v1220
    %v1222 = vpop.f32.mrf.mxu0
    %v1223 = vpop.f32.mrf.mxu0
    %1224 = vdwg.mxu0
    %1225 = vmatprep.subr.bf16.mxu0 0
    %1226 = vmatpush1.bf16.msra.mxu0 %v1111
    %1227 = vmatprep.subr.bf16.mxu0 0
    %1228 = vmatpush1.bf16.msra.mxu0 %v1108
    %1229 = vmatprep.subr.bf16.mxu0 0
    %1230 = vmatpush1.bf16.msra.mxu0 %v1105
    %1231 = vmatprep.subr.bf16.mxu0 0
    %1232 = vmatpush1.bf16.msra.mxu0 %v1102
    %1233 = vmatprep.subr.bf16.mxu0 0
    %1234 = vmatpush1.bf16.msra.mxu0 %v1099
    %1235 = vmatprep.subr.bf16.mxu0 0
    %1236 = vmatpush1.bf16.msra.mxu0 %v1096
    %1237 = vmatprep.subr.bf16.mxu0 0
    %1238 = vmatpush1.bf16.msra.mxu0 %v1093
    %1239 = vmatprep.subr.bf16.mxu0 0
    %1240 = vmatpush1.bf16.msra.mxu0 %v1090
    %1241 = vmatprep.subr.bf16.mxu0 0
    %1242 = vmatpush2.bf16.msra.mxu0 %v1135
    %1243 = vmatprep.subr.bf16.mxu0 0
    %1244 = vmatpush2.bf16.msra.mxu0 %v1132
    %1245 = vmatprep.subr.bf16.mxu0 0
    %1246 = vmatpush2.bf16.msra.mxu0 %v1129
    %1247 = vmatprep.subr.bf16.mxu0 0
    %1248 = vmatpush2.bf16.msra.mxu0 %v1126
    %1249 = vmatprep.subr.bf16.mxu0 0
    %1250 = vmatpush2.bf16.msra.mxu0 %v1123
    %1251 = vmatprep.subr.bf16.mxu0 0
    %1252 = vmatpush2.bf16.msra.mxu0 %v1120
    %1253 = vmatprep.subr.bf16.mxu0 0
    %1254 = vmatpush2.bf16.msra.mxu0 %v1117
    %1255 = vmatprep.subr.bf16.mxu0 0
    %1256 = vmatpush2.bf16.msra.mxu0 %v1114
    %1257 = vmatprep.mubr.bf16.mxu0 %v833
    %1258 = vmatmul.mubr.bf16.gmra.mxu0 %v832
    %v1259 = vpop.f32.mrf.mxu0
    %v1260 = vadd.f32 %v927, %v1259
    %v1261 = vpop.f32.mrf.mxu0
    %v1262 = vpop.f32.mrf.mxu0
    %v1263 = vpop.f32.mrf.mxu0
    %1264 = vdwg.mxu0
    %v1265 = vmax.f32 %v1219, 0.0
    %v1266 = vmax.f32 %v1221, 0.0
    %v1267 = vmax.f32 %v1260, 0.0
    %v1268 = vpack.c.bf16 %v1265, %v1265
    %v1269 = vpack.c.bf16 %v1266, %v1266
    %v1270 = vpack.c.bf16 %v1267, %v1267
    %v1271 = vld [vmem:[#allocation11] sm:$0xf]
    %v1272 = vld [vmem:[#allocation11 + $0x4] sm:$0xf]
    %v1273 = vld [vmem:[#allocation11 + $0x8] sm:$0xf]
    %v1274 = vld [vmem:[#allocation11 + $0xc] sm:$0xf]
    %v1275 = vld [vmem:[#allocation11 + $0x10] sm:$0xf]
    %v1276 = vld [vmem:[#allocation11 + $0x14] sm:$0xf]
    %v1277 = vld [vmem:[#allocation11 + $0x18] sm:$0xf]
    %v1278 = vld [vmem:[#allocation11 + $0x1c] sm:$0xf]
    %v1279 = vld [vmem:[#allocation11 + $0x20] sm:$0xf]
    %v1280 = vld [vmem:[#allocation11 + $0x24] sm:$0xf]
    %v1281 = vld [vmem:[#allocation11 + $0x28] sm:$0xf]
    %v1282 = vld [vmem:[#allocation11 + $0x2c] sm:$0xf]
    %v1283 = vld [vmem:[#allocation11 + $0x30] sm:$0xf]
    %v1284 = vld [vmem:[#allocation11 + $0x34] sm:$0xf]
    %v1285 = vld [vmem:[#allocation11 + $0x38] sm:$0xf]
    %v1286 = vld [vmem:[#allocation11 + $0x3c] sm:$0xf]
    %v1287 = vld [vmem:[#allocation11 + $0x40] sm:$0xf]
    %v1288 = vld [vmem:[#allocation11 + $0x44] sm:$0xf]
    %v1289 = vld [vmem:[#allocation11 + $0x48] sm:$0xf]
    %v1290 = vld [vmem:[#allocation11 + $0x4c] sm:$0xf]
    %v1291 = vld [vmem:[#allocation11 + $0x50] sm:$0xf]
    %v1292 = vld [vmem:[#allocation11 + $0x54] sm:$0xf]
    %v1293 = vld [vmem:[#allocation11 + $0x58] sm:$0xf]
    %v1294 = vld [vmem:[#allocation11 + $0x5c] sm:$0xf]
    %v1295 = vld [vmem:[#allocation11 + $0x60] sm:$0xf]
    %v1296 = vld [vmem:[#allocation11 + $0x64] sm:$0xf]
    %v1297 = vld [vmem:[#allocation11 + $0x68] sm:$0xf]
    %v1298 = vld [vmem:[#allocation11 + $0x6c] sm:$0xf]
    %v1299 = vld [vmem:[#allocation11 + $0x70] sm:$0xf]
    %v1300 = vld [vmem:[#allocation11 + $0x74] sm:$0xf]
    %v1301 = vld [vmem:[#allocation11 + $0x78] sm:$0xf]
    %v1302 = vld [vmem:[#allocation11 + $0x7c] sm:$0xf]
    %v1303 = vld [vmem:[#allocation11 + $0x80] sm:$0xf]
    %v1304 = vld [vmem:[#allocation11 + $0x84] sm:$0xf]
    %v1305 = vld [vmem:[#allocation11 + $0x88] sm:$0xf]
    %v1306 = vld [vmem:[#allocation11 + $0x8c] sm:$0xf]
    %v1307 = vld [vmem:[#allocation11 + $0x90] sm:$0xf]
    %v1308 = vld [vmem:[#allocation11 + $0x94] sm:$0xf]
    %v1309 = vld [vmem:[#allocation11 + $0x98] sm:$0xf]
    %v1310 = vld [vmem:[#allocation11 + $0x9c] sm:$0xf]
    %v1311 = vld [vmem:[#allocation11 + $0xa0] sm:$0xf]
    %v1312 = vld [vmem:[#allocation11 + $0xa4] sm:$0xf]
    %v1313 = vld [vmem:[#allocation11 + $0xa8] sm:$0xf]
    %v1314 = vld [vmem:[#allocation11 + $0xac] sm:$0xf]
    %v1315 = vld [vmem:[#allocation11 + $0xb0] sm:$0xf]
    %v1316 = vld [vmem:[#allocation11 + $0xb4] sm:$0xf]
    %v1317 = vld [vmem:[#allocation11 + $0xb8] sm:$0xf]
    %v1318 = vld [vmem:[#allocation11 + $0xbc] sm:$0xf]
    %v1319 = vld [vmem:[%s8] sm:$0x1]
    %v1320 = vunpack.c.l.bf16 %v1319
    %v1321 = vlaneseq
    %v1322 = vshrl.u32 %v1321, 7
    %v1323 = vsub.s32 0, %v1322
    %v1324 = vrot.slane %v1320, %v1323
    %v1373 = vunpack.c.l.b16 %v1271
    %v1374 = vunpack.c.l.b16 %v1272
    %v1375 = vunpack.c.l.b16 %v1273
    %v1376 = vunpack.c.l.b16 %v1274
    %v1377 = vunpack.c.l.b16 %v1275
    %v1378 = vunpack.c.l.b16 %v1276
    %v1379 = vunpack.c.l.b16 %v1277
    %v1380 = vunpack.c.l.b16 %v1278
    %v1381 = vunpack.c.l.b16 %v1279
    %v1382 = vunpack.c.l.b16 %v1280
    %v1383 = vunpack.c.l.b16 %v1281
    %v1384 = vunpack.c.l.b16 %v1282
    %v1385 = vunpack.c.l.b16 %v1283
    %v1386 = vunpack.c.l.b16 %v1284
    %v1387 = vunpack.c.l.b16 %v1285
    %v1388 = vunpack.c.l.b16 %v1286
    %v1389 = vunpack.c.l.b16 %v1287
    %v1390 = vunpack.c.l.b16 %v1288
    %v1391 = vunpack.c.l.b16 %v1289
    %v1392 = vunpack.c.l.b16 %v1290
    %v1393 = vunpack.c.l.b16 %v1291
    %v1394 = vunpack.c.l.b16 %v1292
    %v1395 = vunpack.c.l.b16 %v1293
    %v1396 = vunpack.c.l.b16 %v1294
    %v1397 = vunpack.c.l.b16 %v1295
    %v1398 = vunpack.c.l.b16 %v1296
    %v1399 = vunpack.c.l.b16 %v1297
    %v1400 = vunpack.c.l.b16 %v1298
    %v1401 = vunpack.c.l.b16 %v1299
    %v1402 = vunpack.c.l.b16 %v1300
    %v1403 = vunpack.c.l.b16 %v1301
    %v1404 = vunpack.c.l.b16 %v1302
    %v1405 = vunpack.c.l.b16 %v1303
    %v1406 = vunpack.c.l.b16 %v1304
    %v1407 = vunpack.c.l.b16 %v1305
    %v1408 = vunpack.c.l.b16 %v1306
    %v1409 = vunpack.c.l.b16 %v1307
    %v1410 = vunpack.c.l.b16 %v1308
    %v1411 = vunpack.c.l.b16 %v1309
    %v1412 = vunpack.c.l.b16 %v1310
    %v1413 = vunpack.c.l.b16 %v1311
    %v1414 = vunpack.c.l.b16 %v1312
    %v1415 = vunpack.c.l.b16 %v1313
    %v1416 = vunpack.c.l.b16 %v1314
    %v1417 = vunpack.c.l.b16 %v1315
    %v1418 = vunpack.c.l.b16 %v1316
    %v1419 = vunpack.c.l.b16 %v1317
    %v1420 = vunpack.c.l.b16 %v1318
    %v1421 = vpack.c.b16 %v1374, %v1373
    %v1422 = vpack.c.b16 %v1376, %v1375
    %v1423 = vpack.c.b16 %v1378, %v1377
    %v1424 = vpack.c.b16 %v1380, %v1379
    %v1425 = vpack.c.b16 %v1382, %v1381
    %v1426 = vpack.c.b16 %v1384, %v1383
    %v1427 = vpack.c.b16 %v1386, %v1385
    %v1428 = vpack.c.b16 %v1388, %v1387
    %v1429 = vpack.c.b16 %v1390, %v1389
    %v1430 = vpack.c.b16 %v1392, %v1391
    %v1431 = vpack.c.b16 %v1394, %v1393
    %v1432 = vpack.c.b16 %v1396, %v1395
    %v1433 = vpack.c.b16 %v1398, %v1397
    %v1434 = vpack.c.b16 %v1400, %v1399
    %v1435 = vpack.c.b16 %v1402, %v1401
    %v1436 = vpack.c.b16 %v1404, %v1403
    %v1437 = vpack.c.b16 %v1406, %v1405
    %v1438 = vpack.c.b16 %v1408, %v1407
    %v1439 = vpack.c.b16 %v1410, %v1409
    %v1440 = vpack.c.b16 %v1412, %v1411
    %v1441 = vpack.c.b16 %v1414, %v1413
    %v1442 = vpack.c.b16 %v1416, %v1415
    %v1443 = vpack.c.b16 %v1418, %v1417
    %v1444 = vpack.c.b16 %v1420, %v1419
    %1469 = vmatprep.subr.bf16.mxu0 0
    %1470 = vmatpush1.bf16.msra.mxu0 %v1428
    %1471 = vmatprep.subr.bf16.mxu0 0
    %1472 = vmatpush1.bf16.msra.mxu0 %v1427
    %1473 = vmatprep.subr.bf16.mxu0 0
    %1474 = vmatpush1.bf16.msra.mxu0 %v1426
    %1475 = vmatprep.subr.bf16.mxu0 0
    %1476 = vmatpush1.bf16.msra.mxu0 %v1425
    %1477 = vmatprep.subr.bf16.mxu0 0
    %1478 = vmatpush1.bf16.msra.mxu0 %v1424
    %1479 = vmatprep.subr.bf16.mxu0 0
    %1480 = vmatpush1.bf16.msra.mxu0 %v1423
    %1481 = vmatprep.subr.bf16.mxu0 0
    %1482 = vmatpush1.bf16.msra.mxu0 %v1422
    %1483 = vmatprep.subr.bf16.mxu0 0
    %1484 = vmatpush1.bf16.msra.mxu0 %v1421
    %1485 = vmatprep.subr.bf16.mxu0 0
    %1486 = vmatpush2.bf16.msra.mxu0 %v1436
    %1487 = vmatprep.subr.bf16.mxu0 0
    %1488 = vmatpush2.bf16.msra.mxu0 %v1435
    %1489 = vmatprep.subr.bf16.mxu0 0
    %1490 = vmatpush2.bf16.msra.mxu0 %v1434
    %1491 = vmatprep.subr.bf16.mxu0 0
    %1492 = vmatpush2.bf16.msra.mxu0 %v1433
    %1493 = vmatprep.subr.bf16.mxu0 0
    %1494 = vmatpush2.bf16.msra.mxu0 %v1432
    %1495 = vmatprep.subr.bf16.mxu0 0
    %1496 = vmatpush2.bf16.msra.mxu0 %v1431
    %1497 = vmatprep.subr.bf16.mxu0 0
    %1498 = vmatpush2.bf16.msra.mxu0 %v1430
    %1499 = vmatprep.subr.bf16.mxu0 0
    %1500 = vmatpush2.bf16.msra.mxu0 %v1429
    %1501 = vmatprep.mubr.bf16.mxu0 %v1269
    %1502 = vmatmul.mubr.bf16.gmra.mxu0 %v1268
    %v1503 = vpop.f32.mrf.mxu0
    %v1504 = vadd.f32 %v1324, %v1503
    %v1505 = vpop.f32.mrf.mxu0
    %v1506 = vpop.f32.mrf.mxu0
    %v1507 = vpop.f32.mrf.mxu0
    %1508 = vdwg.mxu0
    %1509 = vmatprep.subr.bf16.mxu0 0
    %1510 = vmatpush1.bf16.msra.mxu0 %v1444
    %1511 = vmatprep.subr.bf16.mxu0 0
    %1512 = vmatpush1.bf16.msra.mxu0 %v1443
    %1513 = vmatprep.subr.bf16.mxu0 0
    %1514 = vmatpush1.bf16.msra.mxu0 %v1442
    %1515 = vmatprep.subr.bf16.mxu0 0
    %1516 = vmatpush1.bf16.msra.mxu0 %v1441
    %1517 = vmatprep.subr.bf16.mxu0 0
    %1518 = vmatpush1.bf16.msra.mxu0 %v1440
    %1519 = vmatprep.subr.bf16.mxu0 0
    %1520 = vmatpush1.bf16.msra.mxu0 %v1439
    %1521 = vmatprep.subr.bf16.mxu0 0
    %1522 = vmatpush1.bf16.msra.mxu0 %v1438
    %1523 = vmatprep.subr.bf16.mxu0 0
    %1524 = vmatpush1.bf16.msra.mxu0 %v1437
    %1525 = vmatprep.subr.bf16.mxu0 0
    %1526 = vmatpush2.bf16.msra.mxu0 0
    %1527 = vmatprep.subr.bf16.mxu0 0
    %1528 = vmatpush2.bf16.msra.mxu0 0
    %1529 = vmatprep.subr.bf16.mxu0 0
    %1530 = vmatpush2.bf16.msra.mxu0 0
    %1531 = vmatprep.subr.bf16.mxu0 0
    %1532 = vmatpush2.bf16.msra.mxu0 0
    %1533 = vmatprep.subr.bf16.mxu0 0
    %1534 = vmatpush2.bf16.msra.mxu0 0
    %1535 = vmatprep.subr.bf16.mxu0 0
    %1536 = vmatpush2.bf16.msra.mxu0 0
    %1537 = vmatprep.subr.bf16.mxu0 0
    %1538 = vmatpush2.bf16.msra.mxu0 0
    %1539 = vmatprep.subr.bf16.mxu0 0
    %1540 = vmatpush2.bf16.msra.mxu0 0
    %1541 = vmatprep.mubr.bf16.mxu0 0
    %1542 = vmatmul.mubr.bf16.gmra.mxu0 %v1270
    %v1543 = vpop.f32.mrf.mxu0
    %v1544 = vadd.f32 %v1504, %v1543
    %v1545 = vpop.f32.mrf.mxu0
    %v1546 = vpop.f32.mrf.mxu0
    %v1547 = vpop.f32.mrf.mxu0
    %1548 = vdwg.mxu0
    %v1549 = vmax.f32 %v1544, 0.0
    %v1550 = vlaneseq
    %v1551 = vand.u32 %v1550, 127
    %vm1552 = vcmp.eq.s32.totalorder %v1551, 16
    %v1553 = vsel %vm1552, %v1549, 0.0
    %1554 = vadd.xlane.f32.xlu0 %v1553
    %v1555 = vpop.xlane.xlu0 %1554
    %vm1556 = vcmp.lt.s32.totalorder %v1551, 16
    %v1557 = vsel %vm1556, %v1549, 0.0
    %1558 = vadd.xlane.f32.xlu0 %v1557
    %v1559 = vpop.xlane.xlu0 %1558
    %vm1560 = vcmp.eq.s32.totalorder %v1551, 127
    %v1561 = vadd.f32 %v1555, %v1549
    %v1562 = vsel %vm1560, %v1559, %v1561
    %1563 = vst [vmem:[#allocation13] sm:$0xff] %v1562
    // Predicated region
    $region62: #{tpu_custom_call.1} parent=1 // pred_check
      _
    $region63: #{tpu_custom_call.1} parent=1 // pred_check_branch
      %1565 = sbr.rel (0) target = $region65
    $region64: #{tpu_custom_call.1} parent=1 // pred_region
      %s1567 = ssub.s32 128, 128
      %1568 = vsyncadd [#allocation4], %s1567
      %s1570 = sshll.u32 [#allocation13], 4
      %s1571 = int_to_ptr.vmem [resolvable:$true] %s1570
      %1573 = dma.vmem_to_hbm [thread:$0]  %s1571, 128, %s9, [#allocation4]
    $region65: #{tpu_custom_call.1} parent=1 // pred_fallthru
      _
    // Predicated region
    $region66: #{tpu_custom_call.1} parent=1 // pred_check
      _
    $region67: #{tpu_custom_call.1} parent=1 // pred_check_branch
      %1575 = sbr.rel (0) target = $region69
    $region68: #{tpu_custom_call.1} parent=1 // pred_region
      %1576 = dma.done [#allocation4], 128
    $region69: #{tpu_custom_call.1} parent=1 // pred_fallthru
      _
    %1577 = vsyncpa [#allocation3], 1
    %1578 = vsyncpa [#allocation6], 1
    %1579 = vsyncpa [#allocation9], 1
    %1580 = vsyncpa [#allocation12], 1
    %1581 = vsyncpa [#allocation4], 1

</llo_original>
